<compile_context>
chip_gen: v6e
topology: v6e:2x2x1
jax: 0.10.0
libtpu: 0.0.40
codegen_flags: <defaults>
</compile_context>

<pallas_src>
import functools

import numpy as np

import jax
import jax.numpy as jnp
from jax.experimental import pallas as pl
from jax.experimental.pallas import tpu as pltpu


CIN = 3      # input channels
C1 = 16      # conv1 out channels
C2 = 32      # conv2 out channels
FC_H = 128   # classifier hidden width


def _round_up(x, m):
    return ((x + m - 1) // m) * m


# ----------------------------------------------------------------------------
# Fused kernel: one grid step == B_TILE images through the whole network.
# ----------------------------------------------------------------------------
def mycnn_kernel(x_ref, t1_ref, b1_ref, t2_ref, b2_ref,
                 fc1w_ref, fc1b_ref, fc2w_ref, fc2b_ref,
                 o_ref, p1pad_ref):
    # x_ref:    (B, H+2, W*CIN)     row-padded, width/channel-packed images
    # t1_ref:   (3, W*CIN, W*C1)    conv1 Toeplitz weights (one per kernel row)
    # t2_ref:   (3, W2*C1, W2*C2)   conv2 Toeplitz weights
    # b1/b2:    (1, W*C1)/(1, W2*C2) biases tiled in the permuted lane order
    # fc1w_ref: (H4, W4*C2, 128)    fc1 weight split into H4 K-blocks of 128
    # fc2w_ref: (128, KPAD)         num_class zero-padded to a 128 multiple
    # o_ref:    (B, 1, KPAD)
    # p1pad_ref:(B, H2+2, W2*C1)    scratch: vertically padded pool-1 output
    f32 = jnp.float32
    B, Hp, WCin = x_ref.shape
    H = Hp - 2
    H2, H4 = H // 2, H // 4
    WC1 = t1_ref.shape[2]
    half1 = WC1 // 2                 # W2*C1  (=128 for input_size 16)
    WC2 = t2_ref.shape[2]
    half2 = WC2 // 2                 # W4*C2  (=128 for input_size 16)
    KP = fc2w_ref.shape[1]

    # ---- conv1: 3 Toeplitz matmuls (K = W*CIN), bias + ReLU ------------------
    # Horizontal taps + left/right zero padding live inside t1; vertical
    # padding is the two zero rows the wrapper added to x.
    acc1 = jnp.dot(x_ref[:, 0:H, :].reshape(B * H, WCin), t1_ref[0],
                   preferred_element_type=f32)
    acc1 = acc1 + jnp.dot(x_ref[:, 1:H + 1, :].reshape(B * H, WCin), t1_ref[1],
                          preferred_element_type=f32)
    acc1 = acc1 + jnp.dot(x_ref[:, 2:H + 2, :].reshape(B * H, WCin), t1_ref[2],
                          preferred_element_type=f32)
    y1 = jnp.maximum(acc1 + b1_ref[...], 0.0)          # (B*H, W*C1)

    # ---- maxpool1: 2x2 stride 2 (register-resident) --------------------------
    # Column permutation puts even-w outputs in lanes [0, half1) and odd-w in
    # [half1, 2*half1): horizontal pool == max of the two aligned halves.
    ph = jnp.maximum(y1[:, :half1], y1[:, half1:])     # (B*H, W2*C1)
    ph = ph.reshape(B * H2, 2, half1)
    p1 = jnp.maximum(ph[:, 0, :], ph[:, 1, :])         # (B*H2, W2*C1)

    # ---- vertical halo for conv2 (only scratch round-trip; 128-lane dense) ---
    p1pad_ref[:, 0:1, :] = jnp.zeros((B, 1, half1), f32)
    p1pad_ref[:, H2 + 1:H2 + 2, :] = jnp.zeros((B, 1, half1), f32)
    p1pad_ref[:, 1:H2 + 1, :] = p1.reshape(B, H2, half1)

    # ---- conv2: 3 Toeplitz matmuls (K = W2*C1 = 128), bias + ReLU ------------
    acc2 = jnp.dot(p1pad_ref[:, 0:H2, :].reshape(B * H2, half1), t2_ref[0],
                   preferred_element_type=f32)
    acc2 = acc2 + jnp.dot(p1pad_ref[:, 1:H2 + 1, :].reshape(B * H2, half1),
                          t2_ref[1], preferred_element_type=f32)
    acc2 = acc2 + jnp.dot(p1pad_ref[:, 2:H2 + 2, :].reshape(B * H2, half1),
                          t2_ref[2], preferred_element_type=f32)
    y2 = jnp.maximum(acc2 + b2_ref[...], 0.0)          # (B*H2, W2*C2)

    # ---- maxpool2 -------------------------------------------------------------
    qh = jnp.maximum(y2[:, :half2], y2[:, half2:])     # (B*H2, W4*C2)
    qh = qh.reshape(B * H4, 2, half2)
    p2 = jnp.maximum(qh[:, 0, :], qh[:, 1, :])         # (B*H4, W4*C2)

    # ---- classifier -----------------------------------------------------------
    # FC1 is the single (B, H4*W4*C2) x (H4*W4*C2, 128) contraction, computed
    # as H4 aligned K-blocks of W4*C2 (=128) lanes so the pooled features never
    # need a sublane->lane relayout.
    p2 = p2.reshape(B, H4, half2)
    h = fc1b_ref[...]                                  # (1, 128) -> broadcast
    for i in range(H4):
        h = h + jnp.dot(p2[:, i, :], fc1w_ref[i], preferred_element_type=f32)
    h = jnp.maximum(h, 0.0)
    y = jnp.dot(h, fc2w_ref[...], preferred_element_type=f32) + fc2b_ref[...]
    o_ref[...] = y.reshape(B, 1, KP).astype(o_ref.dtype)   # lane-dense store


# ----------------------------------------------------------------------------
# Wrapper: one pallas_call per forward, grid over batch tiles.
# ----------------------------------------------------------------------------
@functools.partial(jax.jit, static_argnames=("num_class", "b_tile"))
def mycnn_forward(x_nchw, kparams, *, num_class, b_tile=None):
    N, Cin, H, W = x_nchw.shape
    assert Cin == CIN and H == W and H % 4 == 0
    H2, W2, H4, W4 = H // 2, W // 2, H // 4, W // 4
    kpad = kparams["fc2"].shape[1]

    if b_tile is None:
        # >= 2 grid steps whenever N >= 2 so v7x's two TensorCores both get
        # work under dimension_semantics=("parallel",); cap keeps VMEM tiny.
        b_tile = max(1, min(64, N // 2))
    n_blocks = -(-N // b_tile)
    n_pad = n_blocks * b_tile

    # Boundary glue only: NCHW -> NHWC, vertical halo pad, pack (W, C) lanes.
    x = jnp.transpose(x_nchw, (0, 2, 3, 1))
    x = jnp.pad(x, ((0, n_pad - N), (1, 1), (0, 0), (0, 0)))
    x = x.reshape(n_pad, H + 2, W * CIN)

    out = pl.pallas_call(
        mycnn_kernel,
        out_shape=jax.ShapeDtypeStruct((n_pad, 1, kpad), jnp.float32),
        grid_spec=pltpu.PrefetchScalarGridSpec(
            num_scalar_prefetch=0,
            grid=(n_blocks,),                         # one step = B_TILE images
            in_specs=[
                pl.BlockSpec((b_tile, H + 2, W * CIN), lambda n: (n, 0, 0)),
                pl.BlockSpec((3, W * CIN, W * C1), lambda n: (0, 0, 0)),
                pl.BlockSpec((1, W * C1), lambda n: (0, 0)),
                pl.BlockSpec((3, W2 * C1, W2 * C2), lambda n: (0, 0, 0)),
                pl.BlockSpec((1, W2 * C2), lambda n: (0, 0)),
                pl.BlockSpec((H4, W4 * C2, FC_H), lambda n: (0, 0, 0)),
                pl.BlockSpec((1, FC_H), lambda n: (0, 0)),
                pl.BlockSpec((FC_H, kpad), lambda n: (0, 0)),
                pl.BlockSpec((1, kpad), lambda n: (0, 0)),
            ],
            out_specs=pl.BlockSpec((b_tile, 1, kpad), lambda n: (n, 0, 0)),
            scratch_shapes=[
                pltpu.VMEM((b_tile, H2 + 2, W2 * C1), jnp.float32),
            ],
        ),
        compiler_params=pltpu.CompilerParams(
            dimension_semantics=("parallel",)),
    )(x, kparams["t1"], kparams["b1"], kparams["t2"], kparams["b2"],
      kparams["fc1"], kparams["fc1_b"], kparams["fc2"], kparams["fc2_b"])
    return out[:N, 0, :num_class]


# ----------------------------------------------------------------------------
# Parameter handling (PyTorch layouts -> kernel layouts, done ONCE).
# ----------------------------------------------------------------------------
def init_params(key, num_class, input_size):
    ks = jax.random.split(key, 8)
    d_feat = (input_size // 4) * (input_size // 4) * C2
    return {
        # PyTorch-shaped params (Conv2d: OIHW, Linear: (out, in))
        "conv1_w": 0.10 * jax.random.normal(ks[0], (C1, CIN, 3, 3), jnp.float32),
        "conv1_b": 0.10 * jax.random.normal(ks[1], (C1,), jnp.float32),
        "conv2_w": 0.10 * jax.random.normal(ks[2], (C2, C1, 3, 3), jnp.float32),
        "conv2_b": 0.10 * jax.random.normal(ks[3], (C2,), jnp.float32),
        "fc1_w": 0.05 * jax.random.normal(ks[4], (FC_H, d_feat), jnp.float32),
        "fc1_b": 0.05 * jax.random.normal(ks[5], (FC_H,), jnp.float32),
        "fc2_w": 0.05 * jax.random.normal(ks[6], (num_class, FC_H), jnp.float32),
        "fc2_b": 0.05 * jax.random.normal(ks[7], (num_class,), jnp.float32),
    }


def prepare_params(params, num_class, input_size):
    """One-time PyTorch -> kernel layout conversion (Toeplitz conv weights,
    permuted/pooled lane orders, padded classifier)."""
    H = W = input_size
    W2, W4, H4 = W // 2, W // 4, H // 4
    kpad = _round_up(max(num_class, 1), 128)

    # Permuted conv output lanes: even-w block | odd-w block, each (w//2, c)
    # minor order, so max-pool partners are exactly half a row apart and the
    # pooled result is already in (w_pooled, c) packed order.
    def lane1(w, co):
        return (w % 2) * (W2 * C1) + (w // 2) * C1 + co

    def lane2(w, co):
        return (w % 2) * (W4 * C2) + (w // 2) * C2 + co

    w1 = np.asarray(params["conv1_w"], np.float32)   # (C1, CIN, 3, 3)
    t1 = np.zeros((3, W * CIN, W * C1), np.float32)
    for kh in range(3):
        for j in range(W):                           # output column
            for kw in range(3):
                wi = j + kw - 1                      # input column (pad folded)
                if 0 <= wi < W:
                    for co in range(C1):
                        t1[kh, wi * CIN:(wi + 1) * CIN, lane1(j, co)] = \
                            w1[co, :, kh, kw]

    w2 = np.asarray(params["conv2_w"], np.float32)   # (C2, C1, 3, 3)
    t2 = np.zeros((3, W2 * C1, W2 * C2), np.float32)
    for kh in range(3):
        for j in range(W2):
            for kw in range(3):
                wi = j + kw - 1
                if 0 <= wi < W2:
                    for co in range(C2):
                        t2[kh, wi * C1:(wi + 1) * C1, lane2(j, co)] = \
                            w2[co, :, kh, kw]

    b1_np = np.asarray(params["conv1_b"], np.float32)
    b1r = np.zeros((1, W * C1), np.float32)
    for j in range(W):
        for co in range(C1):
            b1r[0, lane1(j, co)] = b1_np[co]

    b2_np = np.asarray(params["conv2_b"], np.float32)
    b2r = np.zeros((1, W2 * C2), np.float32)
    for j in range(W2):
        for co in range(C2):
            b2r[0, lane2(j, co)] = b2_np[co]

    # fc1: PyTorch flattens NCHW (c, h4, w4); kernel feeds (h4, w4, c) features
    # split into H4 K-blocks of W4*C2 lanes.
    fc1 = np.asarray(params["fc1_w"], np.float32).reshape(FC_H, C2, H4, W4)
    fc1 = fc1.transpose(2, 3, 1, 0).reshape(H4, W4 * C2, FC_H)
    fc1_b = np.asarray(params["fc1_b"], np.float32).reshape(1, FC_H)

    # fc2: zero-pad num_class -> kpad so the kernel's only HBM store is full
    # 128-lane rows; the wrapper slices the real logits back out.
    fc2 = np.zeros((FC_H, kpad), np.float32)
    fc2[:, :num_class] = np.asarray(params["fc2_w"], np.float32).T
    fc2_b = np.zeros((1, kpad), np.float32)
    fc2_b[0, :num_class] = np.asarray(params["fc2_b"], np.float32)

    return {
        "t1": jnp.asarray(t1), "b1": jnp.asarray(b1r),
        "t2": jnp.asarray(t2), "b2": jnp.asarray(b2r),
        "fc1": jnp.asarray(fc1), "fc1_b": jnp.asarray(fc1_b),
        "fc2": jnp.asarray(fc2), "fc2_b": jnp.asarray(fc2_b),
    }


# ----------------------------------------------------------------------------
# Pure-JAX reference (numerical check vs. the PyTorch semantics).
# ----------------------------------------------------------------------------
def reference_forward(x_nchw, params):
    w1 = jnp.transpose(params["conv1_w"], (2, 3, 1, 0))
    w2 = jnp.transpose(params["conv2_w"], (2, 3, 1, 0))

    def conv(x, w, b):
        y = jax.lax.conv_general_dilated(
            x, w, window_strides=(1, 1), padding="SAME",
            dimension_numbers=("NHWC", "HWIO", "NHWC"),
            precision=jax.lax.Precision.HIGHEST)
        return jnp.maximum(y + b[None, None, None, :], 0.0)

    def pool(x):
        n, h, w, c = x.shape
        return x.reshape(n, h // 2, 2, w // 2, 2, c).max(axis=(2, 4))

    x = jnp.transpose(x_nchw, (0, 2, 3, 1))
    x = pool(conv(x, w1, params["conv1_b"]))
    x = pool(conv(x, w2, params["conv2_b"]))
    n = x.shape[0]
    feats = jnp.transpose(x, (0, 3, 1, 2)).reshape(n, -1)   # NCHW flatten
    h = jnp.maximum(feats @ params["fc1_w"].T + params["fc1_b"], 0.0)
    return h @ params["fc2_w"].T + params["fc2_b"]


if __name__ == "__main__":
    num_class = 10
    input_size = 16          # small, divisible by 4 (two 2x2 pools)
    batch = 8                # -> B_TILE=4, grid of 2 steps

    key = jax.random.PRNGKey(0)
    kx, kp = jax.random.split(key)
    x = jax.random.normal(kx, (batch, CIN, input_size, input_size), jnp.float32)
    params = init_params(kp, num_class, input_size)
    kparams = prepare_params(params, num_class, input_size)

    out = mycnn_forward(x, kparams, num_class=num_class)
    out = jax.block_until_ready(out)
    assert out.shape == (batch, num_class), out.shape

    ref = jax.block_until_ready(reference_forward(x, params))
    assert jnp.allclose(out, ref, rtol=2e-3, atol=2e-3), (
        float(jnp.max(jnp.abs(out - ref))))

    print("KERNEL_OK")
</pallas_src>

<mosaic_0001>
module attributes {stable_mosaic.version = 11 : i64} {
  func.func @mycnn_kernel(%arg0: i32, %arg1: memref<4x18x48xf32, #tpu.memory_space<vmem>>, %arg2: memref<3x48x256xf32, #tpu.memory_space<vmem>>, %arg3: memref<1x256xf32, #tpu.memory_space<vmem>>, %arg4: memref<3x128x256xf32, #tpu.memory_space<vmem>>, %arg5: memref<1x256xf32, #tpu.memory_space<vmem>>, %arg6: memref<4x128x128xf32, #tpu.memory_space<vmem>>, %arg7: memref<1x128xf32, #tpu.memory_space<vmem>>, %arg8: memref<128x128xf32, #tpu.memory_space<vmem>>, %arg9: memref<1x128xf32, #tpu.memory_space<vmem>>, %arg10: memref<4x1x128xf32, #tpu.memory_space<vmem>>, %arg11: memref<4x10x128xf32, #tpu.memory_space<vmem>>) attributes {dimension_semantics = [#tpu.dimension_semantics<parallel>], iteration_bounds = array<i64: 2>, scalar_prefetch = 0 : i64, scratch_operands = 1 : i64, tpu.core_type = #tpu.core_type<tc>, window_params = [{transform_indices = @transform_0, window_bounds = array<i64: 4, 18, 48>}, {pipeline_mode = #tpu.pipeline_mode<synchronous>, transform_indices = @transform_1, window_bounds = array<i64: 3, 48, 256>}, {pipeline_mode = #tpu.pipeline_mode<synchronous>, transform_indices = @transform_2, window_bounds = array<i64: 1, 256>}, {pipeline_mode = #tpu.pipeline_mode<synchronous>, transform_indices = @transform_3, window_bounds = array<i64: 3, 128, 256>}, {pipeline_mode = #tpu.pipeline_mode<synchronous>, transform_indices = @transform_4, window_bounds = array<i64: 1, 256>}, {pipeline_mode = #tpu.pipeline_mode<synchronous>, transform_indices = @transform_5, window_bounds = array<i64: 4, 128, 128>}, {pipeline_mode = #tpu.pipeline_mode<synchronous>, transform_indices = @transform_6, window_bounds = array<i64: 1, 128>}, {pipeline_mode = #tpu.pipeline_mode<synchronous>, transform_indices = @transform_7, window_bounds = array<i64: 128, 128>}, {pipeline_mode = #tpu.pipeline_mode<synchronous>, transform_indices = @transform_8, window_bounds = array<i64: 1, 128>}, {transform_indices = @transform_9, window_bounds = array<i64: 4, 1, 128>}]} {
    %c0 = arith.constant 0 : index
    %c0_0 = arith.constant 0 : index
    %c0_1 = arith.constant 0 : index
    %0 = vector.load %arg1[%c0, %c0_0, %c0_1] : memref<4x18x48xf32, #tpu.memory_space<vmem>>, vector<4x16x48xf32>
    %1 = vector.shape_cast %0 : vector<4x16x48xf32> to vector<64x48xf32>
    %c0_2 = arith.constant 0 : index
    %c0_3 = arith.constant 0 : index
    %c0_4 = arith.constant 0 : index
    %2 = vector.load %arg2[%c0_2, %c0_3, %c0_4] : memref<3x48x256xf32, #tpu.memory_space<vmem>>, vector<1x48x256xf32>
    %3 = vector.shape_cast %2 : vector<1x48x256xf32> to vector<48x256xf32>
    %cst = arith.constant dense<0.000000e+00> : vector<64x256xf32>
    %4 = tpu.matmul %1, %3, %cst {dimension_numbers = #tpu.dot_dimension_numbers<[1], [0], [0], [1], [0, 0, 1, 1], [], []>} : vector<64x48xf32>, vector<48x256xf32>, vector<64x256xf32> -> vector<64x256xf32>
    %c0_5 = arith.constant 0 : index
    %c1 = arith.constant 1 : index
    %c0_6 = arith.constant 0 : index
    %5 = vector.load %arg1[%c0_5, %c1, %c0_6] : memref<4x18x48xf32, #tpu.memory_space<vmem>>, vector<4x16x48xf32>
    %6 = vector.shape_cast %5 : vector<4x16x48xf32> to vector<64x48xf32>
    %c1_7 = arith.constant 1 : index
    %c0_8 = arith.constant 0 : index
    %c0_9 = arith.constant 0 : index
    %7 = vector.load %arg2[%c1_7, %c0_8, %c0_9] : memref<3x48x256xf32, #tpu.memory_space<vmem>>, vector<1x48x256xf32>
    %8 = vector.shape_cast %7 : vector<1x48x256xf32> to vector<48x256xf32>
    %cst_10 = arith.constant dense<0.000000e+00> : vector<64x256xf32>
    %9 = tpu.matmul %6, %8, %cst_10 {dimension_numbers = #tpu.dot_dimension_numbers<[1], [0], [0], [1], [0, 0, 1, 1], [], []>} : vector<64x48xf32>, vector<48x256xf32>, vector<64x256xf32> -> vector<64x256xf32>
    %10 = arith.addf %4, %9 : vector<64x256xf32>
    %c0_11 = arith.constant 0 : index
    %c2 = arith.constant 2 : index
    %c0_12 = arith.constant 0 : index
    %11 = vector.load %arg1[%c0_11, %c2, %c0_12] : memref<4x18x48xf32, #tpu.memory_space<vmem>>, vector<4x16x48xf32>
    %12 = vector.shape_cast %11 : vector<4x16x48xf32> to vector<64x48xf32>
    %c2_13 = arith.constant 2 : index
    %c0_14 = arith.constant 0 : index
    %c0_15 = arith.constant 0 : index
    %13 = vector.load %arg2[%c2_13, %c0_14, %c0_15] : memref<3x48x256xf32, #tpu.memory_space<vmem>>, vector<1x48x256xf32>
    %14 = vector.shape_cast %13 : vector<1x48x256xf32> to vector<48x256xf32>
    %cst_16 = arith.constant dense<0.000000e+00> : vector<64x256xf32>
    %15 = tpu.matmul %12, %14, %cst_16 {dimension_numbers = #tpu.dot_dimension_numbers<[1], [0], [0], [1], [0, 0, 1, 1], [], []>} : vector<64x48xf32>, vector<48x256xf32>, vector<64x256xf32> -> vector<64x256xf32>
    %16 = arith.addf %10, %15 : vector<64x256xf32>
    %c0_17 = arith.constant 0 : index
    %c0_18 = arith.constant 0 : index
    %17 = vector.load %arg3[%c0_17, %c0_18] : memref<1x256xf32, #tpu.memory_space<vmem>>, vector<1x256xf32>
    %18 = vector.broadcast %17 : vector<1x256xf32> to vector<64x256xf32>
    %19 = arith.addf %16, %18 : vector<64x256xf32>
    %cst_19 = arith.constant 0.000000e+00 : f32
    %20 = vector.broadcast %cst_19 : f32 to vector<64x256xf32>
    %21 = arith.maximumf %19, %20 : vector<64x256xf32>
    %22 = vector.extract_strided_slice %21 {offsets = [0, 0], sizes = [64, 128], strides = [1, 1]} : vector<64x256xf32> to vector<64x128xf32>
    %23 = vector.extract_strided_slice %21 {offsets = [0, 128], sizes = [64, 128], strides = [1, 1]} : vector<64x256xf32> to vector<64x128xf32>
    %24 = arith.maximumf %22, %23 : vector<64x128xf32>
    %25 = vector.shape_cast %24 : vector<64x128xf32> to vector<32x2x128xf32>
    %26 = vector.extract_strided_slice %25 {offsets = [0, 0, 0], sizes = [32, 1, 128], strides = [1, 1, 1]} : vector<32x2x128xf32> to vector<32x1x128xf32>
    %27 = vector.shape_cast %26 : vector<32x1x128xf32> to vector<32x128xf32>
    %28 = vector.extract_strided_slice %25 {offsets = [0, 1, 0], sizes = [32, 1, 128], strides = [1, 1, 1]} : vector<32x2x128xf32> to vector<32x1x128xf32>
    %29 = vector.shape_cast %28 : vector<32x1x128xf32> to vector<32x128xf32>
    %30 = arith.maximumf %27, %29 : vector<32x128xf32>
    %cst_20 = arith.constant 0.000000e+00 : f32
    %31 = vector.broadcast %cst_20 : f32 to vector<4x1x128xf32>
    %c0_21 = arith.constant 0 : index
    %c0_22 = arith.constant 0 : index
    %c0_23 = arith.constant 0 : index
    %32 = vector.load %arg11[%c0_21, %c0_22, %c0_23] : memref<4x10x128xf32, #tpu.memory_space<vmem>>, vector<4x1x128xf32>
    tpu.vector_store %arg11[%c0_21, %c0_22, %c0_23], %31 {strides = array<i32>} : memref<4x10x128xf32, #tpu.memory_space<vmem>>, vector<4x1x128xf32>,
    %cst_24 = arith.constant 0.000000e+00 : f32
    %33 = vector.broadcast %cst_24 : f32 to vector<4x1x128xf32>
    %c0_25 = arith.constant 0 : index
    %c9 = arith.constant 9 : index
    %c0_26 = arith.constant 0 : index
    %34 = vector.load %arg11[%c0_25, %c9, %c0_26] : memref<4x10x128xf32, #tpu.memory_space<vmem>>, vector<4x1x128xf32>
    tpu.vector_store %arg11[%c0_25, %c9, %c0_26], %33 {strides = array<i32>} : memref<4x10x128xf32, #tpu.memory_space<vmem>>, vector<4x1x128xf32>,
    %35 = vector.shape_cast %30 : vector<32x128xf32> to vector<4x8x128xf32>
    %c0_27 = arith.constant 0 : index
    %c1_28 = arith.constant 1 : index
    %c0_29 = arith.constant 0 : index
    %36 = vector.load %arg11[%c0_27, %c1_28, %c0_29] : memref<4x10x128xf32, #tpu.memory_space<vmem>>, vector<4x8x128xf32>
    tpu.vector_store %arg11[%c0_27, %c1_28, %c0_29], %35 {strides = array<i32>} : memref<4x10x128xf32, #tpu.memory_space<vmem>>, vector<4x8x128xf32>,
    %c0_30 = arith.constant 0 : index
    %c0_31 = arith.constant 0 : index
    %c0_32 = arith.constant 0 : index
    %37 = vector.load %arg11[%c0_30, %c0_31, %c0_32] : memref<4x10x128xf32, #tpu.memory_space<vmem>>, vector<4x8x128xf32>
    %38 = vector.shape_cast %37 : vector<4x8x128xf32> to vector<32x128xf32>
    %c0_33 = arith.constant 0 : index
    %c0_34 = arith.constant 0 : index
    %c0_35 = arith.constant 0 : index
    %39 = vector.load %arg4[%c0_33, %c0_34, %c0_35] : memref<3x128x256xf32, #tpu.memory_space<vmem>>, vector<1x128x256xf32>
    %40 = vector.shape_cast %39 : vector<1x128x256xf32> to vector<128x256xf32>
    %cst_36 = arith.constant dense<0.000000e+00> : vector<32x256xf32>
    %41 = tpu.matmul %38, %40, %cst_36 {dimension_numbers = #tpu.dot_dimension_numbers<[1], [0], [0], [1], [0, 0, 1, 1], [], []>} : vector<32x128xf32>, vector<128x256xf32>, vector<32x256xf32> -> vector<32x256xf32>
    %c0_37 = arith.constant 0 : index
    %c1_38 = arith.constant 1 : index
    %c0_39 = arith.constant 0 : index
    %42 = vector.load %arg11[%c0_37, %c1_38, %c0_39] : memref<4x10x128xf32, #tpu.memory_space<vmem>>, vector<4x8x128xf32>
    %43 = vector.shape_cast %42 : vector<4x8x128xf32> to vector<32x128xf32>
    %c1_40 = arith.constant 1 : index
    %c0_41 = arith.constant 0 : index
    %c0_42 = arith.constant 0 : index
    %44 = vector.load %arg4[%c1_40, %c0_41, %c0_42] : memref<3x128x256xf32, #tpu.memory_space<vmem>>, vector<1x128x256xf32>
    %45 = vector.shape_cast %44 : vector<1x128x256xf32> to vector<128x256xf32>
    %cst_43 = arith.constant dense<0.000000e+00> : vector<32x256xf32>
    %46 = tpu.matmul %43, %45, %cst_43 {dimension_numbers = #tpu.dot_dimension_numbers<[1], [0], [0], [1], [0, 0, 1, 1], [], []>} : vector<32x128xf32>, vector<128x256xf32>, vector<32x256xf32> -> vector<32x256xf32>
    %47 = arith.addf %41, %46 : vector<32x256xf32>
    %c0_44 = arith.constant 0 : index
    %c2_45 = arith.constant 2 : index
    %c0_46 = arith.constant 0 : index
    %48 = vector.load %arg11[%c0_44, %c2_45, %c0_46] : memref<4x10x128xf32, #tpu.memory_space<vmem>>, vector<4x8x128xf32>
    %49 = vector.shape_cast %48 : vector<4x8x128xf32> to vector<32x128xf32>
    %c2_47 = arith.constant 2 : index
    %c0_48 = arith.constant 0 : index
    %c0_49 = arith.constant 0 : index
    %50 = vector.load %arg4[%c2_47, %c0_48, %c0_49] : memref<3x128x256xf32, #tpu.memory_space<vmem>>, vector<1x128x256xf32>
    %51 = vector.shape_cast %50 : vector<1x128x256xf32> to vector<128x256xf32>
    %cst_50 = arith.constant dense<0.000000e+00> : vector<32x256xf32>
    %52 = tpu.matmul %49, %51, %cst_50 {dimension_numbers = #tpu.dot_dimension_numbers<[1], [0], [0], [1], [0, 0, 1, 1], [], []>} : vector<32x128xf32>, vector<128x256xf32>, vector<32x256xf32> -> vector<32x256xf32>
    %53 = arith.addf %47, %52 : vector<32x256xf32>
    %c0_51 = arith.constant 0 : index
    %c0_52 = arith.constant 0 : index
    %54 = vector.load %arg5[%c0_51, %c0_52] : memref<1x256xf32, #tpu.memory_space<vmem>>, vector<1x256xf32>
    %55 = vector.broadcast %54 : vector<1x256xf32> to vector<32x256xf32>
    %56 = arith.addf %53, %55 : vector<32x256xf32>
    %cst_53 = arith.constant 0.000000e+00 : f32
    %57 = vector.broadcast %cst_53 : f32 to vector<32x256xf32>
    %58 = arith.maximumf %56, %57 : vector<32x256xf32>
    %59 = vector.extract_strided_slice %58 {offsets = [0, 0], sizes = [32, 128], strides = [1, 1]} : vector<32x256xf32> to vector<32x128xf32>
    %60 = vector.extract_strided_slice %58 {offsets = [0, 128], sizes = [32, 128], strides = [1, 1]} : vector<32x256xf32> to vector<32x128xf32>
    %61 = arith.maximumf %59, %60 : vector<32x128xf32>
    %62 = vector.shape_cast %61 : vector<32x128xf32> to vector<16x2x128xf32>
    %63 = vector.extract_strided_slice %62 {offsets = [0, 0, 0], sizes = [16, 1, 128], strides = [1, 1, 1]} : vector<16x2x128xf32> to vector<16x1x128xf32>
    %64 = vector.shape_cast %63 : vector<16x1x128xf32> to vector<16x128xf32>
    %65 = vector.extract_strided_slice %62 {offsets = [0, 1, 0], sizes = [16, 1, 128], strides = [1, 1, 1]} : vector<16x2x128xf32> to vector<16x1x128xf32>
    %66 = vector.shape_cast %65 : vector<16x1x128xf32> to vector<16x128xf32>
    %67 = arith.maximumf %64, %66 : vector<16x128xf32>
    %68 = vector.shape_cast %67 : vector<16x128xf32> to vector<4x4x128xf32>
    %c0_54 = arith.constant 0 : index
    %c0_55 = arith.constant 0 : index
    %69 = vector.load %arg7[%c0_54, %c0_55] : memref<1x128xf32, #tpu.memory_space<vmem>>, vector<1x128xf32>
    %70 = vector.extract_strided_slice %68 {offsets = [0, 0, 0], sizes = [4, 1, 128], strides = [1, 1, 1]} : vector<4x4x128xf32> to vector<4x1x128xf32>
    %71 = vector.shape_cast %70 : vector<4x1x128xf32> to vector<4x128xf32>
    %c0_56 = arith.constant 0 : index
    %c0_57 = arith.constant 0 : index
    %c0_58 = arith.constant 0 : index
    %72 = vector.load %arg6[%c0_56, %c0_57, %c0_58] : memref<4x128x128xf32, #tpu.memory_space<vmem>>, vector<1x128x128xf32>
    %73 = vector.shape_cast %72 : vector<1x128x128xf32> to vector<128x128xf32>
    %cst_59 = arith.constant dense<0.000000e+00> : vector<4x128xf32>
    %74 = tpu.matmul %71, %73, %cst_59 {dimension_numbers = #tpu.dot_dimension_numbers<[1], [0], [0], [1], [0, 0, 1, 1], [], []>} : vector<4x128xf32>, vector<128x128xf32>, vector<4x128xf32> -> vector<4x128xf32>
    %75 = vector.broadcast %69 : vector<1x128xf32> to vector<4x128xf32>
    %76 = arith.addf %75, %74 : vector<4x128xf32>
    %77 = vector.extract_strided_slice %68 {offsets = [0, 1, 0], sizes = [4, 1, 128], strides = [1, 1, 1]} : vector<4x4x128xf32> to vector<4x1x128xf32>
    %78 = vector.shape_cast %77 : vector<4x1x128xf32> to vector<4x128xf32>
    %c1_60 = arith.constant 1 : index
    %c0_61 = arith.constant 0 : index
    %c0_62 = arith.constant 0 : index
    %79 = vector.load %arg6[%c1_60, %c0_61, %c0_62] : memref<4x128x128xf32, #tpu.memory_space<vmem>>, vector<1x128x128xf32>
    %80 = vector.shape_cast %79 : vector<1x128x128xf32> to vector<128x128xf32>
    %cst_63 = arith.constant dense<0.000000e+00> : vector<4x128xf32>
    %81 = tpu.matmul %78, %80, %cst_63 {dimension_numbers = #tpu.dot_dimension_numbers<[1], [0], [0], [1], [0, 0, 1, 1], [], []>} : vector<4x128xf32>, vector<128x128xf32>, vector<4x128xf32> -> vector<4x128xf32>
    %82 = arith.addf %76, %81 : vector<4x128xf32>
    %83 = vector.extract_strided_slice %68 {offsets = [0, 2, 0], sizes = [4, 1, 128], strides = [1, 1, 1]} : vector<4x4x128xf32> to vector<4x1x128xf32>
    %84 = vector.shape_cast %83 : vector<4x1x128xf32> to vector<4x128xf32>
    %c2_64 = arith.constant 2 : index
    %c0_65 = arith.constant 0 : index
    %c0_66 = arith.constant 0 : index
    %85 = vector.load %arg6[%c2_64, %c0_65, %c0_66] : memref<4x128x128xf32, #tpu.memory_space<vmem>>, vector<1x128x128xf32>
    %86 = vector.shape_cast %85 : vector<1x128x128xf32> to vector<128x128xf32>
    %cst_67 = arith.constant dense<0.000000e+00> : vector<4x128xf32>
    %87 = tpu.matmul %84, %86, %cst_67 {dimension_numbers = #tpu.dot_dimension_numbers<[1], [0], [0], [1], [0, 0, 1, 1], [], []>} : vector<4x128xf32>, vector<128x128xf32>, vector<4x128xf32> -> vector<4x128xf32>
    %88 = arith.addf %82, %87 : vector<4x128xf32>
    %89 = vector.extract_strided_slice %68 {offsets = [0, 3, 0], sizes = [4, 1, 128], strides = [1, 1, 1]} : vector<4x4x128xf32> to vector<4x1x128xf32>
    %90 = vector.shape_cast %89 : vector<4x1x128xf32> to vector<4x128xf32>
    %c3 = arith.constant 3 : index
    %c0_68 = arith.constant 0 : index
    %c0_69 = arith.constant 0 : index
    %91 = vector.load %arg6[%c3, %c0_68, %c0_69] : memref<4x128x128xf32, #tpu.memory_space<vmem>>, vector<1x128x128xf32>
    %92 = vector.shape_cast %91 : vector<1x128x128xf32> to vector<128x128xf32>
    %cst_70 = arith.constant dense<0.000000e+00> : vector<4x128xf32>
    %93 = tpu.matmul %90, %92, %cst_70 {dimension_numbers = #tpu.dot_dimension_numbers<[1], [0], [0], [1], [0, 0, 1, 1], [], []>} : vector<4x128xf32>, vector<128x128xf32>, vector<4x128xf32> -> vector<4x128xf32>
    %94 = arith.addf %88, %93 : vector<4x128xf32>
    %cst_71 = arith.constant 0.000000e+00 : f32
    %95 = vector.broadcast %cst_71 : f32 to vector<4x128xf32>
    %96 = arith.maximumf %94, %95 : vector<4x128xf32>
    %c0_72 = arith.constant 0 : index
    %c0_73 = arith.constant 0 : index
    %97 = vector.load %arg8[%c0_72, %c0_73] : memref<128x128xf32, #tpu.memory_space<vmem>>, vector<128x128xf32>
    %cst_74 = arith.constant dense<0.000000e+00> : vector<4x128xf32>
    %98 = tpu.matmul %96, %97, %cst_74 {dimension_numbers = #tpu.dot_dimension_numbers<[1], [0], [0], [1], [0, 0, 1, 1], [], []>} : vector<4x128xf32>, vector<128x128xf32>, vector<4x128xf32> -> vector<4x128xf32>
    %c0_75 = arith.constant 0 : index
    %c0_76 = arith.constant 0 : index
    %99 = vector.load %arg9[%c0_75, %c0_76] : memref<1x128xf32, #tpu.memory_space<vmem>>, vector<1x128xf32>
    %100 = vector.broadcast %99 : vector<1x128xf32> to vector<4x128xf32>
    %101 = arith.addf %98, %100 : vector<4x128xf32>
    %102 = vector.shape_cast %101 : vector<4x128xf32> to vector<4x1x128xf32>
    %c0_77 = arith.constant 0 : index
    %c0_78 = arith.constant 0 : index
    %c0_79 = arith.constant 0 : index
    %103 = vector.load %arg10[%c0_77, %c0_78, %c0_79] : memref<4x1x128xf32, #tpu.memory_space<vmem>>, vector<4x1x128xf32>
    tpu.vector_store %arg10[%c0_77, %c0_78, %c0_79], %102 {strides = array<i32>} : memref<4x1x128xf32, #tpu.memory_space<vmem>>, vector<4x1x128xf32>,
    return
  }
  func.func @transform_0(%arg0: i32) -> (i32, i32, i32) {
    %c0_i32 = arith.constant 0 : i32
    %c0_i32_0 = arith.constant 0 : i32
    %c0_i32_1 = arith.constant 0 : i32
    return %arg0, %c0_i32, %c0_i32_0 : i32, i32, i32
  }
  func.func @transform_1(%arg0: i32) -> (i32, i32, i32) {
    %c0_i32 = arith.constant 0 : i32
    %c0_i32_0 = arith.constant 0 : i32
    %c0_i32_1 = arith.constant 0 : i32
    %c0_i32_2 = arith.constant 0 : i32
    return %c0_i32, %c0_i32_0, %c0_i32_1 : i32, i32, i32
  }
  func.func @transform_2(%arg0: i32) -> (i32, i32) {
    %c0_i32 = arith.constant 0 : i32
    %c0_i32_0 = arith.constant 0 : i32
    %c0_i32_1 = arith.constant 0 : i32
    return %c0_i32, %c0_i32_0 : i32, i32
  }
  func.func @transform_3(%arg0: i32) -> (i32, i32, i32) {
    %c0_i32 = arith.constant 0 : i32
    %c0_i32_0 = arith.constant 0 : i32
    %c0_i32_1 = arith.constant 0 : i32
    %c0_i32_2 = arith.constant 0 : i32
    return %c0_i32, %c0_i32_0, %c0_i32_1 : i32, i32, i32
  }
  func.func @transform_4(%arg0: i32) -> (i32, i32) {
    %c0_i32 = arith.constant 0 : i32
    %c0_i32_0 = arith.constant 0 : i32
    %c0_i32_1 = arith.constant 0 : i32
    return %c0_i32, %c0_i32_0 : i32, i32
  }
  func.func @transform_5(%arg0: i32) -> (i32, i32, i32) {
    %c0_i32 = arith.constant 0 : i32
    %c0_i32_0 = arith.constant 0 : i32
    %c0_i32_1 = arith.constant 0 : i32
    %c0_i32_2 = arith.constant 0 : i32
    return %c0_i32, %c0_i32_0, %c0_i32_1 : i32, i32, i32
  }
  func.func @transform_6(%arg0: i32) -> (i32, i32) {
    %c0_i32 = arith.constant 0 : i32
    %c0_i32_0 = arith.constant 0 : i32
    %c0_i32_1 = arith.constant 0 : i32
    return %c0_i32, %c0_i32_0 : i32, i32
  }
  func.func @transform_7(%arg0: i32) -> (i32, i32) {
    %c0_i32 = arith.constant 0 : i32
    %c0_i32_0 = arith.constant 0 : i32
    %c0_i32_1 = arith.constant 0 : i32
    return %c0_i32, %c0_i32_0 : i32, i32
  }
  func.func @transform_8(%arg0: i32) -> (i32, i32) {
    %c0_i32 = arith.constant 0 : i32
    %c0_i32_0 = arith.constant 0 : i32
    %c0_i32_1 = arith.constant 0 : i32
    return %c0_i32, %c0_i32_0 : i32, i32
  }
  func.func @transform_9(%arg0: i32) -> (i32, i32, i32) {
    %c0_i32 = arith.constant 0 : i32
    %c0_i32_0 = arith.constant 0 : i32
    %c0_i32_1 = arith.constant 0 : i32
    return %arg0, %c0_i32, %c0_i32_0 : i32, i32, i32
  }
}

</mosaic_0001>

<llo_original>
// kernel: mycnn_forward.1
$region0: #{mycnn_forward.1}
  #allocation0 [shape = 'u32[]', space=smem, size = 0x4, offset = 0x4, fixed_abs, tag = 'smem constant byte address 0x4 - core index']
  #allocation1 [shape = 'u32[144,128]{1,0:T(1,128)}', space=vmem, size = 0x12000, scoped, tag = 'internal scratch']
  #allocation2 [shape = 'f32[4,10,128]{2,1,0:T(8,128)}', space=vmem, size = 0x8000, scoped, tag = 'scratch operand']
  %s0 = inlined_call_operand.vmem [shape: f32[8,18,48], index: 0, kind: input, shape index: {}]
  %s1 = inlined_call_operand.vmem [shape: f32[3,48,256], index: 1, kind: input, shape index: {}]
  %s2 = inlined_call_operand.vmem [shape: f32[1,256], index: 2, kind: input, shape index: {}]
  %s3 = inlined_call_operand.vmem [shape: f32[3,128,256], index: 3, kind: input, shape index: {}]
  %s4 = inlined_call_operand.vmem [shape: f32[1,256], index: 4, kind: input, shape index: {}]
  %s5 = inlined_call_operand.vmem [shape: f32[4,128,128], index: 5, kind: input, shape index: {}]
  %s6 = inlined_call_operand.vmem [shape: f32[1,128], index: 6, kind: input, shape index: {}]
  %s7 = inlined_call_operand.vmem [shape: f32[128,128], index: 7, kind: input, shape index: {}]
  %s8 = inlined_call_operand.vmem [shape: f32[1,128], index: 8, kind: input, shape index: {}]
  %s9 = inlined_call_operand.hbm [shape: f32[8,1,128], index: 9, kind: output, shape index: {}]
  %s10 = sld [smem:[#allocation0]]
  $region69: #{mycnn_forward.1} parent=0
    _
  %s12 = ssub.s32 1, %s10
  %s13 = scalar_select 0, %s12, %s10
  $region1: #{mycnn_forward.1} parent=0
    #allocation3 [shape = 'u8[4096]{0}', space=vmem, size = 0x1000, scoped, tag = 'output window, operand 0']
    #allocation4 [shape = 's32[2]{0}', space=sflag, size = 0x8, scoped, tag = 'scoped memory for mycnn_forward.1']
    %14 = vsyncpa [#allocation4], 0
    %s15 = scalar_lea.sflag [#allocation4], 1
    %16 = vsyncpa %s15, 0
    loop: start=0, step=1, limit=4
    $region2: #{mycnn_forward.1} parent=1 // loop_pre_header
      _
    $region3: #{mycnn_forward.1} parent=1 // loop_header
      %s18 = sphi 0, %s22
      %p19 = scmp.ge.s32.totalorder %s18, 4
      %s28 = sphi 0, %s30
      %s31 = sphi 0, %s28
      %s32 = sphi 0, %s31
      %s48 = sphi 0, %s32
      %s52 = sphi 0, %s52
      %s54 = sphi 0, %s52
      %s55 = sphi 0, %s54
      %s69 = sphi 0, %s55
      %s73 = sphi 0, %s73
      %s75 = sphi 0, %s73
      %s76 = sphi 0, %s75
      %s90 = sphi 0, %s76
      %s94 = sphi 0, %s94
      %s96 = sphi 0, %s94
      %s97 = sphi 0, %s96
      %s111 = sphi 0, %s97
      %s115 = sphi 0, %s115
      %s117 = sphi 0, %s115
      %s118 = sphi 0, %s117
      %s132 = sphi 0, %s118
      %s136 = sphi 0, %s136
      %s138 = sphi 0, %s136
      %s139 = sphi 0, %s138
      %s153 = sphi 0, %s139
      %s157 = sphi 0, %s157
      %s159 = sphi 0, %s157
      %s160 = sphi 0, %s159
      %s174 = sphi 0, %s160
      %s178 = sphi 0, %s178
      %s180 = sphi 0, %s178
      %s181 = sphi 0, %s180
      %s195 = sphi 0, %s181
      %s199 = sphi 0, %s199
      %s201 = sphi 0, %s199
      %s202 = sphi 0, %s201
      %s216 = sphi 0, %s202
      %s222 = sphi 0, %s224
      %s225 = sphi 0, %s222
      %s226 = sphi 0, %s225
      %s242 = sphi 0, %s226
    $region4: #{mycnn_forward.1} parent=1 // loop_header_branch
      %21 = sbr.rel (%p19) target = $region8
    $region5: #{mycnn_forward.1} parent=1 // loop_body
      %s23 = ssub.s32 %s18, 1
      %s24 = ssub.s32 %s18, 2
      %s25 = sadd.s32 %s18, 1
      %s26 = ssub.s32 %s18, %s25
      %p27 = scmp.eq.s32.totalorder %s26, 0
      %s29 = sadd.s32 %s28, 1
      %s30 = scalar_select %p27, %s28, %s29
      %p33 = pneg %p27
      %p34 = scmp.eq.s32.totalorder %s18, 1
      %p35 = por %p33, %p34
      %p36 = scmp.ne.s32.totalorder %s28, %s31
      %p37 = scmp.eq.s32.totalorder %s18, 0
      %p38 = por %p36, %p37
      %p39 = scmp.ne.s32.totalorder %s28, %s31
      %p40 = scmp.eq.s32.totalorder %s23, 1
      %p41 = por %p39, %p40
      %p42 = scmp.ne.s32.totalorder %s31, %s32
      %p43 = scmp.eq.s32.totalorder %s23, 0
      %p44 = por %p42, %p43
      %p45 = scmp.ne.s32.totalorder %s31, %s32
      %p46 = scmp.eq.s32.totalorder %s24, 1
      %p47 = por %p45, %p46
      %p49 = scmp.ne.s32.totalorder %s32, %s48
      %p50 = scmp.eq.s32.totalorder %s24, 0
      %p51 = por %p49, %p50
      %s53 = sadd.s32 %s52, 1
      %p56 = scmp.eq.s32.totalorder %s18, 1
      %p57 = scmp.ne.s32.totalorder %s52, %s54
      %p58 = scmp.eq.s32.totalorder %s18, 0
      %p59 = por %p57, %p58
      %p60 = scmp.ne.s32.totalorder %s52, %s54
      %p61 = scmp.eq.s32.totalorder %s23, 1
      %p62 = por %p60, %p61
      %p63 = scmp.ne.s32.totalorder %s54, %s55
      %p64 = scmp.eq.s32.totalorder %s23, 0
      %p65 = por %p63, %p64
      %p66 = scmp.ne.s32.totalorder %s54, %s55
      %p67 = scmp.eq.s32.totalorder %s24, 1
      %p68 = por %p66, %p67
      %p70 = scmp.ne.s32.totalorder %s55, %s69
      %p71 = scmp.eq.s32.totalorder %s24, 0
      %p72 = por %p70, %p71
      %s74 = sadd.s32 %s73, 1
      %p77 = scmp.eq.s32.totalorder %s18, 1
      %p78 = scmp.ne.s32.totalorder %s73, %s75
      %p79 = scmp.eq.s32.totalorder %s18, 0
      %p80 = por %p78, %p79
      %p81 = scmp.ne.s32.totalorder %s73, %s75
      %p82 = scmp.eq.s32.totalorder %s23, 1
      %p83 = por %p81, %p82
      %p84 = scmp.ne.s32.totalorder %s75, %s76
      %p85 = scmp.eq.s32.totalorder %s23, 0
      %p86 = por %p84, %p85
      %p87 = scmp.ne.s32.totalorder %s75, %s76
      %p88 = scmp.eq.s32.totalorder %s24, 1
      %p89 = por %p87, %p88
      %p91 = scmp.ne.s32.totalorder %s76, %s90
      %p92 = scmp.eq.s32.totalorder %s24, 0
      %p93 = por %p91, %p92
      %s95 = sadd.s32 %s94, 1
      %p98 = scmp.eq.s32.totalorder %s18, 1
      %p99 = scmp.ne.s32.totalorder %s94, %s96
      %p100 = scmp.eq.s32.totalorder %s18, 0
      %p101 = por %p99, %p100
      %p102 = scmp.ne.s32.totalorder %s94, %s96
      %p103 = scmp.eq.s32.totalorder %s23, 1
      %p104 = por %p102, %p103
      %p105 = scmp.ne.s32.totalorder %s96, %s97
      %p106 = scmp.eq.s32.totalorder %s23, 0
      %p107 = por %p105, %p106
      %p108 = scmp.ne.s32.totalorder %s96, %s97
      %p109 = scmp.eq.s32.totalorder %s24, 1
      %p110 = por %p108, %p109
      %p112 = scmp.ne.s32.totalorder %s97, %s111
      %p113 = scmp.eq.s32.totalorder %s24, 0
      %p114 = por %p112, %p113
      %s116 = sadd.s32 %s115, 1
      %p119 = scmp.eq.s32.totalorder %s18, 1
      %p120 = scmp.ne.s32.totalorder %s115, %s117
      %p121 = scmp.eq.s32.totalorder %s18, 0
      %p122 = por %p120, %p121
      %p123 = scmp.ne.s32.totalorder %s115, %s117
      %p124 = scmp.eq.s32.totalorder %s23, 1
      %p125 = por %p123, %p124
      %p126 = scmp.ne.s32.totalorder %s117, %s118
      %p127 = scmp.eq.s32.totalorder %s23, 0
      %p128 = por %p126, %p127
      %p129 = scmp.ne.s32.totalorder %s117, %s118
      %p130 = scmp.eq.s32.totalorder %s24, 1
      %p131 = por %p129, %p130
      %p133 = scmp.ne.s32.totalorder %s118, %s132
      %p134 = scmp.eq.s32.totalorder %s24, 0
      %p135 = por %p133, %p134
      %s137 = sadd.s32 %s136, 1
      %p140 = scmp.eq.s32.totalorder %s18, 1
      %p141 = scmp.ne.s32.totalorder %s136, %s138
      %p142 = scmp.eq.s32.totalorder %s18, 0
      %p143 = por %p141, %p142
      %p144 = scmp.ne.s32.totalorder %s136, %s138
      %p145 = scmp.eq.s32.totalorder %s23, 1
      %p146 = por %p144, %p145
      %p147 = scmp.ne.s32.totalorder %s138, %s139
      %p148 = scmp.eq.s32.totalorder %s23, 0
      %p149 = por %p147, %p148
      %p150 = scmp.ne.s32.totalorder %s138, %s139
      %p151 = scmp.eq.s32.totalorder %s24, 1
      %p152 = por %p150, %p151
      %p154 = scmp.ne.s32.totalorder %s139, %s153
      %p155 = scmp.eq.s32.totalorder %s24, 0
      %p156 = por %p154, %p155
      %s158 = sadd.s32 %s157, 1
      %p161 = scmp.eq.s32.totalorder %s18, 1
      %p162 = scmp.ne.s32.totalorder %s157, %s159
      %p163 = scmp.eq.s32.totalorder %s18, 0
      %p164 = por %p162, %p163
      %p165 = scmp.ne.s32.totalorder %s157, %s159
      %p166 = scmp.eq.s32.totalorder %s23, 1
      %p167 = por %p165, %p166
      %p168 = scmp.ne.s32.totalorder %s159, %s160
      %p169 = scmp.eq.s32.totalorder %s23, 0
      %p170 = por %p168, %p169
      %p171 = scmp.ne.s32.totalorder %s159, %s160
      %p172 = scmp.eq.s32.totalorder %s24, 1
      %p173 = por %p171, %p172
      %p175 = scmp.ne.s32.totalorder %s160, %s174
      %p176 = scmp.eq.s32.totalorder %s24, 0
      %p177 = por %p175, %p176
      %s179 = sadd.s32 %s178, 1
      %p182 = scmp.eq.s32.totalorder %s18, 1
      %p183 = scmp.ne.s32.totalorder %s178, %s180
      %p184 = scmp.eq.s32.totalorder %s18, 0
      %p185 = por %p183, %p184
      %p186 = scmp.ne.s32.totalorder %s178, %s180
      %p187 = scmp.eq.s32.totalorder %s23, 1
      %p188 = por %p186, %p187
      %p189 = scmp.ne.s32.totalorder %s180, %s181
      %p190 = scmp.eq.s32.totalorder %s23, 0
      %p191 = por %p189, %p190
      %p192 = scmp.ne.s32.totalorder %s180, %s181
      %p193 = scmp.eq.s32.totalorder %s24, 1
      %p194 = por %p192, %p193
      %p196 = scmp.ne.s32.totalorder %s181, %s195
      %p197 = scmp.eq.s32.totalorder %s24, 0
      %p198 = por %p196, %p197
      %s200 = sadd.s32 %s199, 1
      %p203 = scmp.eq.s32.totalorder %s18, 1
      %p204 = scmp.ne.s32.totalorder %s199, %s201
      %p205 = scmp.eq.s32.totalorder %s18, 0
      %p206 = por %p204, %p205
      %p207 = scmp.ne.s32.totalorder %s199, %s201
      %p208 = scmp.eq.s32.totalorder %s23, 1
      %p209 = por %p207, %p208
      %p210 = scmp.ne.s32.totalorder %s201, %s202
      %p211 = scmp.eq.s32.totalorder %s23, 0
      %p212 = por %p210, %p211
      %p213 = scmp.ne.s32.totalorder %s201, %s202
      %p214 = scmp.eq.s32.totalorder %s24, 1
      %p215 = por %p213, %p214
      %p217 = scmp.ne.s32.totalorder %s202, %s216
      %p218 = scmp.eq.s32.totalorder %s24, 0
      %p219 = por %p217, %p218
      %s220 = ssub.s32 %s18, %s25
      %p221 = scmp.eq.s32.totalorder %s220, 0
      %s223 = sadd.s32 %s222, 1
      %s224 = scalar_select %p221, %s222, %s223
      %p227 = pneg %p221
      %p228 = scmp.eq.s32.totalorder %s18, 1
      %p229 = por %p227, %p228
      %p230 = scmp.ne.s32.totalorder %s222, %s225
      %p231 = scmp.eq.s32.totalorder %s18, 0
      %p232 = por %p230, %p231
      %p233 = scmp.ne.s32.totalorder %s222, %s225
      %p234 = scmp.eq.s32.totalorder %s23, 1
      %p235 = por %p233, %p234
      %p236 = scmp.ne.s32.totalorder %s225, %s226
      %p237 = scmp.eq.s32.totalorder %s23, 0
      %p238 = por %p236, %p237
      %p239 = scmp.ne.s32.totalorder %s225, %s226
      %p240 = scmp.eq.s32.totalorder %s24, 1
      %p241 = por %p239, %p240
      %p243 = scmp.ne.s32.totalorder %s226, %s242
      %p244 = scmp.eq.s32.totalorder %s24, 0
      %p245 = por %p243, %p244
      %p246 = scmp.le.s32.totalorder 1, %s18
      %p247 = scmp.lt.s32.totalorder %s18, 3
      %p248 = pnand %p246, %p247
      %p249 = pneg %p248
      // Predicated region
      $region9: #{mycnn_forward.1} parent=5 // pred_check
        _
      $region10: #{mycnn_forward.1} parent=5 // pred_check_branch
        %251 = sbr.rel (%p248) target = $region12
      $region11: #{mycnn_forward.1} parent=5 // pred_region
        %s252 = ssub.s32 %s18, 1
        // Predicated region
        $region13: #{mycnn_forward.1} parent=11 // pred_check
          %p253 = pneg %p65
        $region14: #{mycnn_forward.1} parent=11 // pred_check_branch
          %255 = sbr.rel (%p253) target = $region16
        $region15: #{mycnn_forward.1} parent=11 // pred_region
          _
        $region16: #{mycnn_forward.1} parent=11 // pred_fallthru
          _
        // Predicated region
        $region17: #{mycnn_forward.1} parent=11 // pred_check
          %p256 = pneg %p86
        $region18: #{mycnn_forward.1} parent=11 // pred_check_branch
          %258 = sbr.rel (%p256) target = $region20
        $region19: #{mycnn_forward.1} parent=11 // pred_region
          _
        $region20: #{mycnn_forward.1} parent=11 // pred_fallthru
          _
        // Predicated region
        $region21: #{mycnn_forward.1} parent=11 // pred_check
          %p259 = pneg %p107
        $region22: #{mycnn_forward.1} parent=11 // pred_check_branch
          %261 = sbr.rel (%p259) target = $region24
        $region23: #{mycnn_forward.1} parent=11 // pred_region
          _
        $region24: #{mycnn_forward.1} parent=11 // pred_fallthru
          _
        // Predicated region
        $region25: #{mycnn_forward.1} parent=11 // pred_check
          %p262 = pneg %p128
        $region26: #{mycnn_forward.1} parent=11 // pred_check_branch
          %264 = sbr.rel (%p262) target = $region28
        $region27: #{mycnn_forward.1} parent=11 // pred_region
          _
        $region28: #{mycnn_forward.1} parent=11 // pred_fallthru
          _
        // Predicated region
        $region29: #{mycnn_forward.1} parent=11 // pred_check
          %p265 = pneg %p149
        $region30: #{mycnn_forward.1} parent=11 // pred_check_branch
          %267 = sbr.rel (%p265) target = $region32
        $region31: #{mycnn_forward.1} parent=11 // pred_region
          _
        $region32: #{mycnn_forward.1} parent=11 // pred_fallthru
          _
        // Predicated region
        $region33: #{mycnn_forward.1} parent=11 // pred_check
          %p268 = pneg %p170
        $region34: #{mycnn_forward.1} parent=11 // pred_check_branch
          %270 = sbr.rel (%p268) target = $region36
        $region35: #{mycnn_forward.1} parent=11 // pred_region
          _
        $region36: #{mycnn_forward.1} parent=11 // pred_fallthru
          _
        // Predicated region
        $region37: #{mycnn_forward.1} parent=11 // pred_check
          %p271 = pneg %p191
        $region38: #{mycnn_forward.1} parent=11 // pred_check_branch
          %273 = sbr.rel (%p271) target = $region40
        $region39: #{mycnn_forward.1} parent=11 // pred_region
          _
        $region40: #{mycnn_forward.1} parent=11 // pred_fallthru
          _
        // Predicated region
        $region41: #{mycnn_forward.1} parent=11 // pred_check
          %p274 = pneg %p212
        $region42: #{mycnn_forward.1} parent=11 // pred_check_branch
          %276 = sbr.rel (%p274) target = $region44
        $region43: #{mycnn_forward.1} parent=11 // pred_region
          _
        $region44: #{mycnn_forward.1} parent=11 // pred_fallthru
          _
      $region12: #{mycnn_forward.1} parent=5 // pred_fallthru
        _
      %p277 = scmp.lt.s32.totalorder %s18, 2
      // Predicated region
      $region45: #{mycnn_forward.1} parent=5 // pred_check
        %p278 = pneg %p277
      $region46: #{mycnn_forward.1} parent=5 // pred_check_branch
        %280 = sbr.rel (%p278) target = $region48
      $region47: #{mycnn_forward.1} parent=5 // pred_region
        // Predicated region
        $region49: #{mycnn_forward.1} parent=47 // pred_check
          %p281 = pneg %p38
        $region50: #{mycnn_forward.1} parent=47 // pred_check_branch
          %283 = sbr.rel (%p281) target = $region52
        $region51: #{mycnn_forward.1} parent=47 // pred_region
          %s284 = smul.u32 4, %s18
          %p285 = scmp.lt.s32.totalorder %s284, 7
          %s286 = scalar_select %p285, %s284, 7
          %s287 = smul.addr %s286, 3
          %s288 = smul.addr %s287, 8
          %s289 = scalar_lea.vmem %s0, %s288
          %s290 = smul.u32 4, %s18
        $region52: #{mycnn_forward.1} parent=47 // pred_fallthru
          _
      $region48: #{mycnn_forward.1} parent=5 // pred_fallthru
        _
      %p291 = scmp.le.s32.totalorder 1, %s18
      %p292 = scmp.lt.s32.totalorder %s18, 3
      %p293 = pnand %p291, %p292
      %p294 = pneg %p293
      // Predicated region
      $region53: #{mycnn_forward.1} parent=5 // pred_check
        _
      $region54: #{mycnn_forward.1} parent=5 // pred_check_branch
        %296 = sbr.rel (%p293) target = $region56
      $region55: #{mycnn_forward.1} parent=5 // pred_region
        %s297 = ssub.s32 %s18, 1
        %s298 = smul.u32 4, %s23
        %p299 = scmp.lt.s32.totalorder %s298, 7
        %s300 = scalar_select %p299, %s298, 7
        %s301 = smul.addr %s300, 3
        %s302 = smul.addr %s301, 8
        %s303 = scalar_lea.vmem %s0, %s302
        %p304 = pneg %p44
        %p305 = pneg %p41
        %p306 = pneg %p65
        %p307 = pneg %p62
        %p308 = pneg %p86
        %p309 = pneg %p83
        %p310 = pneg %p107
        %p311 = pneg %p104
        %p312 = pneg %p128
        %p313 = pneg %p125
        %p314 = pneg %p149
        %p315 = pneg %p146
        %p316 = pneg %p170
        %p317 = pneg %p167
        %p318 = pneg %p191
        %p319 = pneg %p188
        %p320 = pneg %p212
        %p321 = pneg %p209
        %p322 = pneg %p238
        %p323 = pneg %p235
        %s324 = sand.u32 %s225, 1
        %s325 = scalar_lea.sflag [#allocation4], %s324
        %s326 = sand.u32 %s225, 1
        %s327 = smul.addr %s326, 4
        %s328 = scalar_lea.vmem [#allocation3], %s327
        %s329 = smul.u32 4, %s23
        %p330 = scmp.lt.s32.totalorder %s329, 7
        %s331 = scalar_select %p330, %s329, 7
        %s332 = smul.addr %s331, 3
        %s333 = smul.addr %s332, 8
        %s334 = scalar_lea.vmem %s0, %s333
        %s335 = smul.u32 4, %s23
        %s336 = smul.u32 4, %s23
        %v337 = vld [vmem:[%s334] sm:$0xff]
        %v338 = vld [vmem:[%s334 + $0x8] sm:$0xff]
        %v339 = vld [vmem:[%s334 + $0x18] sm:$0xff]
        %v340 = vld [vmem:[%s334 + $0x20] sm:$0xff]
        %v341 = vld [vmem:[%s334 + $0x30] sm:$0xff]
        %v342 = vld [vmem:[%s334 + $0x38] sm:$0xff]
        %v343 = vld [vmem:[%s334 + $0x48] sm:$0xff]
        %v344 = vld [vmem:[%s334 + $0x50] sm:$0xff]
        %v345 = vld [vmem:[%s1] sm:$0xff]
        %v346 = vld [vmem:[%s1 + $0x8] sm:$0xff]
        %v347 = vld [vmem:[%s1 + $0x10] sm:$0xff]
        %v348 = vld [vmem:[%s1 + $0x18] sm:$0xff]
        %v349 = vld [vmem:[%s1 + $0x20] sm:$0xff]
        %v350 = vld [vmem:[%s1 + $0x28] sm:$0xff]
        %v351 = vld [vmem:[%s1 + $0x30] sm:$0xff]
        %v352 = vld [vmem:[%s1 + $0x38] sm:$0xff]
        %v353 = vld [vmem:[%s1 + $0x40] sm:$0xff]
        %v354 = vld [vmem:[%s1 + $0x48] sm:$0xff]
        %v355 = vld [vmem:[%s1 + $0x50] sm:$0xff]
        %v356 = vld [vmem:[%s1 + $0x58] sm:$0xff]
        %v357 = vld [vmem:[%s334 + $0x1] sm:$0xff]
        %v358 = vld [vmem:[%s334 + $0x9] sm:$0xff]
        %v359 = vld [vmem:[%s334 + $0x19] sm:$0xff]
        %v360 = vld [vmem:[%s334 + $0x21] sm:$0xff]
        %v361 = vld [vmem:[%s334 + $0x31] sm:$0xff]
        %v362 = vld [vmem:[%s334 + $0x39] sm:$0xff]
        %v363 = vld [vmem:[%s334 + $0x49] sm:$0xff]
        %v364 = vld [vmem:[%s334 + $0x51] sm:$0xff]
        %s365 = scalar_lea.vmem %s1, 96
        %v366 = vld [vmem:[%s365] sm:$0xff]
        %v367 = vld [vmem:[%s365 + $0x8] sm:$0xff]
        %v368 = vld [vmem:[%s365 + $0x10] sm:$0xff]
        %v369 = vld [vmem:[%s365 + $0x18] sm:$0xff]
        %v370 = vld [vmem:[%s365 + $0x20] sm:$0xff]
        %v371 = vld [vmem:[%s365 + $0x28] sm:$0xff]
        %v372 = vld [vmem:[%s365 + $0x30] sm:$0xff]
        %v373 = vld [vmem:[%s365 + $0x38] sm:$0xff]
        %v374 = vld [vmem:[%s365 + $0x40] sm:$0xff]
        %v375 = vld [vmem:[%s365 + $0x48] sm:$0xff]
        %v376 = vld [vmem:[%s365 + $0x50] sm:$0xff]
        %v377 = vld [vmem:[%s365 + $0x58] sm:$0xff]
        %vm378 = vcmask 392192
        %v380 = vsel %vm378, %v357, 0
        %v383 = vsel %vm378, %v358, 0
        %v386 = vsel %vm378, %v359, 0
        %v389 = vsel %vm378, %v360, 0
        %v392 = vsel %vm378, %v361, 0
        %v395 = vsel %vm378, %v362, 0
        %v398 = vsel %vm378, %v363, 0
        %v401 = vsel %vm378, %v364, 0
        %403 = vmatprep.subr.mxu0 0.0
        %404 = vmatpush1.msra.mxu0 0.0
        %405 = vmatprep.subr.mxu0 0.0
        %406 = vmatpush1.msra.mxu0 0.0
        %407 = vmatprep.subr.mxu0 0.0
        %408 = vmatpush1.msra.mxu0 0.0
        %409 = vmatprep.subr.mxu0 0.0
        %410 = vmatpush1.msra.mxu0 0.0
        %411 = vmatprep.subr.mxu0 0.0
        %412 = vmatpush1.msra.mxu0 0.0
        %413 = vmatprep.subr.mxu0 0.0
        %414 = vmatpush1.msra.mxu0 0.0
        %415 = vmatprep.subr.mxu0 0.0
        %416 = vmatpush1.msra.mxu0 0.0
        %417 = vmatprep.subr.mxu0 0.0
        %418 = vmatpush1.msra.mxu0 0.0
        %419 = vmatprep.subr.mxu0 0.0
        %420 = vmatpush1.msra.mxu0 0.0
        %421 = vmatprep.subr.mxu0 0.0
        %422 = vmatpush1.msra.mxu0 0.0
        %423 = vmatprep.subr.mxu0 %v377
        %424 = vmatpush1.msra.mxu0 %v376
        %425 = vmatprep.subr.mxu0 %v375
        %426 = vmatpush1.msra.mxu0 %v374
        %427 = vmatprep.subr.mxu0 %v373
        %428 = vmatpush1.msra.mxu0 %v372
        %429 = vmatprep.subr.mxu0 %v371
        %430 = vmatpush1.msra.mxu0 %v370
        %431 = vmatprep.subr.mxu0 %v369
        %432 = vmatpush1.msra.mxu0 %v368
        %433 = vmatprep.subr.mxu0 %v367
        %434 = vmatpush1.msra.mxu0 %v366
        %435 = vmatprep.subr.mxu0 0.0
        %436 = vmatpush2.msra.mxu0 0.0
        %437 = vmatprep.subr.mxu0 0.0
        %438 = vmatpush2.msra.mxu0 0.0
        %439 = vmatprep.subr.mxu0 0.0
        %440 = vmatpush2.msra.mxu0 0.0
        %441 = vmatprep.subr.mxu0 0.0
        %442 = vmatpush2.msra.mxu0 0.0
        %443 = vmatprep.subr.mxu0 0.0
        %444 = vmatpush2.msra.mxu0 0.0
        %445 = vmatprep.subr.mxu0 0.0
        %446 = vmatpush2.msra.mxu0 0.0
        %447 = vmatprep.subr.mxu0 0.0
        %448 = vmatpush2.msra.mxu0 0.0
        %449 = vmatprep.subr.mxu0 0.0
        %450 = vmatpush2.msra.mxu0 0.0
        %451 = vmatprep.subr.mxu0 0.0
        %452 = vmatpush2.msra.mxu0 0.0
        %453 = vmatprep.subr.mxu0 0.0
        %454 = vmatpush2.msra.mxu0 0.0
        %455 = vmatprep.subr.mxu0 0.0
        %456 = vmatpush2.msra.mxu0 0.0
        %457 = vmatprep.subr.mxu0 0.0
        %458 = vmatpush2.msra.mxu0 0.0
        %459 = vmatprep.subr.mxu0 0.0
        %460 = vmatpush2.msra.mxu0 0.0
        %461 = vmatprep.subr.mxu0 0.0
        %462 = vmatpush2.msra.mxu0 0.0
        %463 = vmatprep.subr.mxu0 0.0
        %464 = vmatpush2.msra.mxu0 0.0
        %465 = vmatprep.subr.mxu0 0.0
        %466 = vmatpush2.msra.mxu0 0.0
        %467 = vmatprep.mubr.f32.mxu0 0.0
        %468 = vmatmul.mubr.f32.gmra.mxu0 %v380
        %v469 = vpop.f32.mrf.mxu0
        %v470 = vadd.f32 0.0, %v469
        %v471 = vpop.f32.mrf.mxu0
        %v472 = vadd.f32 0.0, %v471
        %473 = vmatprep.mubr.f32.mxu0 0.0
        %474 = vmatmul.mubr.f32.gmra.mxu0 %v383
        %v475 = vpop.f32.mrf.mxu0
        %v476 = vadd.f32 0.0, %v475
        %v477 = vpop.f32.mrf.mxu0
        %v478 = vadd.f32 0.0, %v477
        %479 = vmatprep.mubr.f32.mxu0 0.0
        %480 = vmatmul.mubr.f32.gmra.mxu0 %v386
        %v481 = vpop.f32.mrf.mxu0
        %v482 = vadd.f32 0.0, %v481
        %v483 = vpop.f32.mrf.mxu0
        %v484 = vadd.f32 0.0, %v483
        %485 = vmatprep.mubr.f32.mxu0 0.0
        %486 = vmatmul.mubr.f32.gmra.mxu0 %v389
        %v487 = vpop.f32.mrf.mxu0
        %v488 = vadd.f32 0.0, %v487
        %v489 = vpop.f32.mrf.mxu0
        %v490 = vadd.f32 0.0, %v489
        %491 = vmatprep.mubr.f32.mxu0 0.0
        %492 = vmatmul.mubr.f32.gmra.mxu0 %v392
        %v493 = vpop.f32.mrf.mxu0
        %v494 = vadd.f32 0.0, %v493
        %v495 = vpop.f32.mrf.mxu0
        %v496 = vadd.f32 0.0, %v495
        %497 = vmatprep.mubr.f32.mxu0 0.0
        %498 = vmatmul.mubr.f32.gmra.mxu0 %v395
        %v499 = vpop.f32.mrf.mxu0
        %v500 = vadd.f32 0.0, %v499
        %v501 = vpop.f32.mrf.mxu0
        %v502 = vadd.f32 0.0, %v501
        %503 = vmatprep.mubr.f32.mxu0 0.0
        %504 = vmatmul.mubr.f32.gmra.mxu0 %v398
        %v505 = vpop.f32.mrf.mxu0
        %v506 = vadd.f32 0.0, %v505
        %v507 = vpop.f32.mrf.mxu0
        %v508 = vadd.f32 0.0, %v507
        %509 = vmatprep.mubr.f32.mxu0 0.0
        %510 = vmatmul.mubr.f32.gmra.mxu0 %v401
        %v511 = vpop.f32.mrf.mxu0
        %v512 = vadd.f32 0.0, %v511
        %v513 = vpop.f32.mrf.mxu0
        %v514 = vadd.f32 0.0, %v513
        %515 = vdwg.mxu0
        %v517 = vsel %vm378, %v337, 0
        %v520 = vsel %vm378, %v338, 0
        %v523 = vsel %vm378, %v339, 0
        %v526 = vsel %vm378, %v340, 0
        %v529 = vsel %vm378, %v341, 0
        %v532 = vsel %vm378, %v342, 0
        %v535 = vsel %vm378, %v343, 0
        %v538 = vsel %vm378, %v344, 0
        %540 = vmatprep.subr.mxu0 0.0
        %541 = vmatpush1.msra.mxu0 0.0
        %542 = vmatprep.subr.mxu0 0.0
        %543 = vmatpush1.msra.mxu0 0.0
        %544 = vmatprep.subr.mxu0 0.0
        %545 = vmatpush1.msra.mxu0 0.0
        %546 = vmatprep.subr.mxu0 0.0
        %547 = vmatpush1.msra.mxu0 0.0
        %548 = vmatprep.subr.mxu0 0.0
        %549 = vmatpush1.msra.mxu0 0.0
        %550 = vmatprep.subr.mxu0 0.0
        %551 = vmatpush1.msra.mxu0 0.0
        %552 = vmatprep.subr.mxu0 0.0
        %553 = vmatpush1.msra.mxu0 0.0
        %554 = vmatprep.subr.mxu0 0.0
        %555 = vmatpush1.msra.mxu0 0.0
        %556 = vmatprep.subr.mxu0 0.0
        %557 = vmatpush1.msra.mxu0 0.0
        %558 = vmatprep.subr.mxu0 0.0
        %559 = vmatpush1.msra.mxu0 0.0
        %560 = vmatprep.subr.mxu0 %v356
        %561 = vmatpush1.msra.mxu0 %v355
        %562 = vmatprep.subr.mxu0 %v354
        %563 = vmatpush1.msra.mxu0 %v353
        %564 = vmatprep.subr.mxu0 %v352
        %565 = vmatpush1.msra.mxu0 %v351
        %566 = vmatprep.subr.mxu0 %v350
        %567 = vmatpush1.msra.mxu0 %v349
        %568 = vmatprep.subr.mxu0 %v348
        %569 = vmatpush1.msra.mxu0 %v347
        %570 = vmatprep.subr.mxu0 %v346
        %571 = vmatpush1.msra.mxu0 %v345
        %572 = vmatprep.subr.mxu0 0.0
        %573 = vmatpush2.msra.mxu0 0.0
        %574 = vmatprep.subr.mxu0 0.0
        %575 = vmatpush2.msra.mxu0 0.0
        %576 = vmatprep.subr.mxu0 0.0
        %577 = vmatpush2.msra.mxu0 0.0
        %578 = vmatprep.subr.mxu0 0.0
        %579 = vmatpush2.msra.mxu0 0.0
        %580 = vmatprep.subr.mxu0 0.0
        %581 = vmatpush2.msra.mxu0 0.0
        %582 = vmatprep.subr.mxu0 0.0
        %583 = vmatpush2.msra.mxu0 0.0
        %584 = vmatprep.subr.mxu0 0.0
        %585 = vmatpush2.msra.mxu0 0.0
        %586 = vmatprep.subr.mxu0 0.0
        %587 = vmatpush2.msra.mxu0 0.0
        %588 = vmatprep.subr.mxu0 0.0
        %589 = vmatpush2.msra.mxu0 0.0
        %590 = vmatprep.subr.mxu0 0.0
        %591 = vmatpush2.msra.mxu0 0.0
        %592 = vmatprep.subr.mxu0 0.0
        %593 = vmatpush2.msra.mxu0 0.0
        %594 = vmatprep.subr.mxu0 0.0
        %595 = vmatpush2.msra.mxu0 0.0
        %596 = vmatprep.subr.mxu0 0.0
        %597 = vmatpush2.msra.mxu0 0.0
        %598 = vmatprep.subr.mxu0 0.0
        %599 = vmatpush2.msra.mxu0 0.0
        %600 = vmatprep.subr.mxu0 0.0
        %601 = vmatpush2.msra.mxu0 0.0
        %602 = vmatprep.subr.mxu0 0.0
        %603 = vmatpush2.msra.mxu0 0.0
        %604 = vmatprep.mubr.f32.mxu0 0.0
        %605 = vmatmul.mubr.f32.gmra.mxu0 %v517
        %v606 = vpop.f32.mrf.mxu0
        %v607 = vadd.f32 %v470, %v606
        %v608 = vpop.f32.mrf.mxu0
        %v609 = vadd.f32 %v472, %v608
        %610 = vmatprep.mubr.f32.mxu0 0.0
        %611 = vmatmul.mubr.f32.gmra.mxu0 %v520
        %v612 = vpop.f32.mrf.mxu0
        %v613 = vadd.f32 %v476, %v612
        %v614 = vpop.f32.mrf.mxu0
        %v615 = vadd.f32 %v478, %v614
        %616 = vmatprep.mubr.f32.mxu0 0.0
        %617 = vmatmul.mubr.f32.gmra.mxu0 %v523
        %v618 = vpop.f32.mrf.mxu0
        %v619 = vadd.f32 %v482, %v618
        %v620 = vpop.f32.mrf.mxu0
        %v621 = vadd.f32 %v484, %v620
        %622 = vmatprep.mubr.f32.mxu0 0.0
        %623 = vmatmul.mubr.f32.gmra.mxu0 %v526
        %v624 = vpop.f32.mrf.mxu0
        %v625 = vadd.f32 %v488, %v624
        %v626 = vpop.f32.mrf.mxu0
        %v627 = vadd.f32 %v490, %v626
        %628 = vmatprep.mubr.f32.mxu0 0.0
        %629 = vmatmul.mubr.f32.gmra.mxu0 %v529
        %v630 = vpop.f32.mrf.mxu0
        %v631 = vadd.f32 %v494, %v630
        %v632 = vpop.f32.mrf.mxu0
        %v633 = vadd.f32 %v496, %v632
        %634 = vmatprep.mubr.f32.mxu0 0.0
        %635 = vmatmul.mubr.f32.gmra.mxu0 %v532
        %v636 = vpop.f32.mrf.mxu0
        %v637 = vadd.f32 %v500, %v636
        %v638 = vpop.f32.mrf.mxu0
        %v639 = vadd.f32 %v502, %v638
        %640 = vmatprep.mubr.f32.mxu0 0.0
        %641 = vmatmul.mubr.f32.gmra.mxu0 %v535
        %v642 = vpop.f32.mrf.mxu0
        %v643 = vadd.f32 %v506, %v642
        %v644 = vpop.f32.mrf.mxu0
        %v645 = vadd.f32 %v508, %v644
        %646 = vmatprep.mubr.f32.mxu0 0.0
        %647 = vmatmul.mubr.f32.gmra.mxu0 %v538
        %v648 = vpop.f32.mrf.mxu0
        %v649 = vadd.f32 %v512, %v648
        %v650 = vpop.f32.mrf.mxu0
        %v651 = vadd.f32 %v514, %v650
        %652 = vdwg.mxu0
        %v653 = vld [vmem:[%s334 + $0x2] sm:$0xff]
        %v654 = vld [vmem:[%s334 + $0xa] sm:$0xff]
        %v655 = vld [vmem:[%s334 + $0x1a] sm:$0xff]
        %v656 = vld [vmem:[%s334 + $0x22] sm:$0xff]
        %v657 = vld [vmem:[%s334 + $0x32] sm:$0xff]
        %v658 = vld [vmem:[%s334 + $0x3a] sm:$0xff]
        %v659 = vld [vmem:[%s334 + $0x4a] sm:$0xff]
        %v660 = vld [vmem:[%s334 + $0x52] sm:$0xff]
        %s661 = scalar_lea.vmem %s1, 192
        %v662 = vld [vmem:[%s661] sm:$0xff]
        %v663 = vld [vmem:[%s661 + $0x8] sm:$0xff]
        %v664 = vld [vmem:[%s661 + $0x10] sm:$0xff]
        %v665 = vld [vmem:[%s661 + $0x18] sm:$0xff]
        %v666 = vld [vmem:[%s661 + $0x20] sm:$0xff]
        %v667 = vld [vmem:[%s661 + $0x28] sm:$0xff]
        %v668 = vld [vmem:[%s661 + $0x30] sm:$0xff]
        %v669 = vld [vmem:[%s661 + $0x38] sm:$0xff]
        %v670 = vld [vmem:[%s661 + $0x40] sm:$0xff]
        %v671 = vld [vmem:[%s661 + $0x48] sm:$0xff]
        %v672 = vld [vmem:[%s661 + $0x50] sm:$0xff]
        %v673 = vld [vmem:[%s661 + $0x58] sm:$0xff]
        %v675 = vsel %vm378, %v653, 0
        %v678 = vsel %vm378, %v654, 0
        %v681 = vsel %vm378, %v655, 0
        %v684 = vsel %vm378, %v656, 0
        %v687 = vsel %vm378, %v657, 0
        %v690 = vsel %vm378, %v658, 0
        %v693 = vsel %vm378, %v659, 0
        %v696 = vsel %vm378, %v660, 0
        %698 = vmatprep.subr.mxu0 0.0
        %699 = vmatpush1.msra.mxu0 0.0
        %700 = vmatprep.subr.mxu0 0.0
        %701 = vmatpush1.msra.mxu0 0.0
        %702 = vmatprep.subr.mxu0 0.0
        %703 = vmatpush1.msra.mxu0 0.0
        %704 = vmatprep.subr.mxu0 0.0
        %705 = vmatpush1.msra.mxu0 0.0
        %706 = vmatprep.subr.mxu0 0.0
        %707 = vmatpush1.msra.mxu0 0.0
        %708 = vmatprep.subr.mxu0 0.0
        %709 = vmatpush1.msra.mxu0 0.0
        %710 = vmatprep.subr.mxu0 0.0
        %711 = vmatpush1.msra.mxu0 0.0
        %712 = vmatprep.subr.mxu0 0.0
        %713 = vmatpush1.msra.mxu0 0.0
        %714 = vmatprep.subr.mxu0 0.0
        %715 = vmatpush1.msra.mxu0 0.0
        %716 = vmatprep.subr.mxu0 0.0
        %717 = vmatpush1.msra.mxu0 0.0
        %718 = vmatprep.subr.mxu0 %v673
        %719 = vmatpush1.msra.mxu0 %v672
        %720 = vmatprep.subr.mxu0 %v671
        %721 = vmatpush1.msra.mxu0 %v670
        %722 = vmatprep.subr.mxu0 %v669
        %723 = vmatpush1.msra.mxu0 %v668
        %724 = vmatprep.subr.mxu0 %v667
        %725 = vmatpush1.msra.mxu0 %v666
        %726 = vmatprep.subr.mxu0 %v665
        %727 = vmatpush1.msra.mxu0 %v664
        %728 = vmatprep.subr.mxu0 %v663
        %729 = vmatpush1.msra.mxu0 %v662
        %730 = vmatprep.subr.mxu0 0.0
        %731 = vmatpush2.msra.mxu0 0.0
        %732 = vmatprep.subr.mxu0 0.0
        %733 = vmatpush2.msra.mxu0 0.0
        %734 = vmatprep.subr.mxu0 0.0
        %735 = vmatpush2.msra.mxu0 0.0
        %736 = vmatprep.subr.mxu0 0.0
        %737 = vmatpush2.msra.mxu0 0.0
        %738 = vmatprep.subr.mxu0 0.0
        %739 = vmatpush2.msra.mxu0 0.0
        %740 = vmatprep.subr.mxu0 0.0
        %741 = vmatpush2.msra.mxu0 0.0
        %742 = vmatprep.subr.mxu0 0.0
        %743 = vmatpush2.msra.mxu0 0.0
        %744 = vmatprep.subr.mxu0 0.0
        %745 = vmatpush2.msra.mxu0 0.0
        %746 = vmatprep.subr.mxu0 0.0
        %747 = vmatpush2.msra.mxu0 0.0
        %748 = vmatprep.subr.mxu0 0.0
        %749 = vmatpush2.msra.mxu0 0.0
        %750 = vmatprep.subr.mxu0 0.0
        %751 = vmatpush2.msra.mxu0 0.0
        %752 = vmatprep.subr.mxu0 0.0
        %753 = vmatpush2.msra.mxu0 0.0
        %754 = vmatprep.subr.mxu0 0.0
        %755 = vmatpush2.msra.mxu0 0.0
        %756 = vmatprep.subr.mxu0 0.0
        %757 = vmatpush2.msra.mxu0 0.0
        %758 = vmatprep.subr.mxu0 0.0
        %759 = vmatpush2.msra.mxu0 0.0
        %760 = vmatprep.subr.mxu0 0.0
        %761 = vmatpush2.msra.mxu0 0.0
        %762 = vmatprep.mubr.f32.mxu0 0.0
        %763 = vmatmul.mubr.f32.gmra.mxu0 %v675
        %v764 = vpop.f32.mrf.mxu0
        %v765 = vadd.f32 0.0, %v764
        %v766 = vpop.f32.mrf.mxu0
        %v767 = vadd.f32 0.0, %v766
        %768 = vmatprep.mubr.f32.mxu0 0.0
        %769 = vmatmul.mubr.f32.gmra.mxu0 %v678
        %v770 = vpop.f32.mrf.mxu0
        %v771 = vadd.f32 0.0, %v770
        %v772 = vpop.f32.mrf.mxu0
        %v773 = vadd.f32 0.0, %v772
        %774 = vmatprep.mubr.f32.mxu0 0.0
        %775 = vmatmul.mubr.f32.gmra.mxu0 %v681
        %v776 = vpop.f32.mrf.mxu0
        %v777 = vadd.f32 0.0, %v776
        %v778 = vpop.f32.mrf.mxu0
        %v779 = vadd.f32 0.0, %v778
        %780 = vmatprep.mubr.f32.mxu0 0.0
        %781 = vmatmul.mubr.f32.gmra.mxu0 %v684
        %v782 = vpop.f32.mrf.mxu0
        %v783 = vadd.f32 0.0, %v782
        %v784 = vpop.f32.mrf.mxu0
        %v785 = vadd.f32 0.0, %v784
        %786 = vmatprep.mubr.f32.mxu0 0.0
        %787 = vmatmul.mubr.f32.gmra.mxu0 %v687
        %v788 = vpop.f32.mrf.mxu0
        %v789 = vadd.f32 0.0, %v788
        %v790 = vpop.f32.mrf.mxu0
        %v791 = vadd.f32 0.0, %v790
        %792 = vmatprep.mubr.f32.mxu0 0.0
        %793 = vmatmul.mubr.f32.gmra.mxu0 %v690
        %v794 = vpop.f32.mrf.mxu0
        %v795 = vadd.f32 0.0, %v794
        %v796 = vpop.f32.mrf.mxu0
        %v797 = vadd.f32 0.0, %v796
        %798 = vmatprep.mubr.f32.mxu0 0.0
        %799 = vmatmul.mubr.f32.gmra.mxu0 %v693
        %v800 = vpop.f32.mrf.mxu0
        %v801 = vadd.f32 0.0, %v800
        %v802 = vpop.f32.mrf.mxu0
        %v803 = vadd.f32 0.0, %v802
        %804 = vmatprep.mubr.f32.mxu0 0.0
        %805 = vmatmul.mubr.f32.gmra.mxu0 %v696
        %v806 = vpop.f32.mrf.mxu0
        %v807 = vadd.f32 0.0, %v806
        %v808 = vpop.f32.mrf.mxu0
        %v809 = vadd.f32 0.0, %v808
        %810 = vdwg.mxu0
        %v811 = vadd.f32 %v607, %v765
        %v812 = vadd.f32 %v609, %v767
        %v813 = vadd.f32 %v613, %v771
        %v814 = vadd.f32 %v615, %v773
        %v815 = vadd.f32 %v619, %v777
        %v816 = vadd.f32 %v621, %v779
        %v817 = vadd.f32 %v625, %v783
        %v818 = vadd.f32 %v627, %v785
        %v819 = vadd.f32 %v631, %v789
        %v820 = vadd.f32 %v633, %v791
        %v821 = vadd.f32 %v637, %v795
        %v822 = vadd.f32 %v639, %v797
        %v823 = vadd.f32 %v643, %v801
        %v824 = vadd.f32 %v645, %v803
        %v825 = vadd.f32 %v649, %v807
        %v826 = vadd.f32 %v651, %v809
        %v827 = vld [vmem:[%s2] sm:$0x3]
        %v829 = vlaneseq
        %v830 = vshrl.u32 %v829, 7
        %v831 = vsub.s32 0, %v830
        %v832 = vrot.slane %v827, %v831
        %v833 = vlaneseq
        %v834 = vshrl.u32 %v833, 7
        %v835 = vsub.s32 1, %v834
        %v836 = vrot.slane %v827, %v835
        %v839 = vadd.f32 %v811, %v832
        %v840 = vadd.f32 %v812, %v836
        %v841 = vadd.f32 %v813, %v832
        %v842 = vadd.f32 %v814, %v836
        %v843 = vadd.f32 %v815, %v832
        %v844 = vadd.f32 %v816, %v836
        %v845 = vadd.f32 %v817, %v832
        %v846 = vadd.f32 %v818, %v836
        %v847 = vadd.f32 %v819, %v832
        %v848 = vadd.f32 %v820, %v836
        %v849 = vadd.f32 %v821, %v832
        %v850 = vadd.f32 %v822, %v836
        %v851 = vadd.f32 %v823, %v832
        %v852 = vadd.f32 %v824, %v836
        %v853 = vadd.f32 %v825, %v832
        %v854 = vadd.f32 %v826, %v836
        %v855 = vmax.f32 %v839, 0.0
        %v856 = vmax.f32 %v840, 0.0
        %v857 = vmax.f32 %v841, 0.0
        %v858 = vmax.f32 %v842, 0.0
        %v859 = vmax.f32 %v843, 0.0
        %v860 = vmax.f32 %v844, 0.0
        %v861 = vmax.f32 %v845, 0.0
        %v862 = vmax.f32 %v846, 0.0
        %v863 = vmax.f32 %v847, 0.0
        %v864 = vmax.f32 %v848, 0.0
        %v865 = vmax.f32 %v849, 0.0
        %v866 = vmax.f32 %v850, 0.0
        %v867 = vmax.f32 %v851, 0.0
        %v868 = vmax.f32 %v852, 0.0
        %v869 = vmax.f32 %v853, 0.0
        %v870 = vmax.f32 %v854, 0.0
        %v871 = vmax.f32 %v855, %v856
        %v872 = vmax.f32 %v857, %v858
        %v873 = vmax.f32 %v859, %v860
        %v874 = vmax.f32 %v861, %v862
        %v875 = vmax.f32 %v863, %v864
        %v876 = vmax.f32 %v865, %v866
        %v877 = vmax.f32 %v867, %v868
        %v878 = vmax.f32 %v869, %v870
        %v887 = vcombine.high %v871, %v871
        %v889 = vunpack.c.l.s4 1983009808
        %v890 = vunpack.c.0.s8 %v889
        %v891 = vlaneseq
        %v892 = vshrl.u32 %v891, 7
        %v893 = vsub.s32 %v890, %v892
        %v894 = vrot.slane %v871, %v893
        %v896 = vunpack.c.l.s4 1983009808
        %v897 = vunpack.c.0.s8 %v896
        %v898 = vlaneseq
        %v899 = vshrl.u32 %v898, 7
        %v900 = vsub.s32 %v897, %v899
        %v901 = vrot.slane %v887, %v900
        %v902 = vcombine.high %v894, %v894
        %v903 = vcombine.high %v901, %v901
        %v904 = vcombine.high %v872, %v872
        %v906 = vunpack.c.l.s4 1983009808
        %v907 = vunpack.c.0.s8 %v906
        %v908 = vlaneseq
        %v909 = vshrl.u32 %v908, 7
        %v910 = vsub.s32 %v907, %v909
        %v911 = vrot.slane %v872, %v910
        %v913 = vunpack.c.l.s4 1983009808
        %v914 = vunpack.c.0.s8 %v913
        %v915 = vlaneseq
        %v916 = vshrl.u32 %v915, 7
        %v917 = vsub.s32 %v914, %v916
        %v918 = vrot.slane %v904, %v917
        %v919 = vcombine.high %v911, %v911
        %v920 = vcombine.high %v918, %v918
        %v921 = vcombine.high %v873, %v873
        %v923 = vunpack.c.l.s4 1983009808
        %v924 = vunpack.c.0.s8 %v923
        %v925 = vlaneseq
        %v926 = vshrl.u32 %v925, 7
        %v927 = vsub.s32 %v924, %v926
        %v928 = vrot.slane %v873, %v927
        %v930 = vunpack.c.l.s4 1983009808
        %v931 = vunpack.c.0.s8 %v930
        %v932 = vlaneseq
        %v933 = vshrl.u32 %v932, 7
        %v934 = vsub.s32 %v931, %v933
        %v935 = vrot.slane %v921, %v934
        %v936 = vcombine.high %v928, %v928
        %v937 = vcombine.high %v935, %v935
        %v938 = vcombine.high %v874, %v874
        %v940 = vunpack.c.l.s4 1983009808
        %v941 = vunpack.c.0.s8 %v940
        %v942 = vlaneseq
        %v943 = vshrl.u32 %v942, 7
        %v944 = vsub.s32 %v941, %v943
        %v945 = vrot.slane %v874, %v944
        %v947 = vunpack.c.l.s4 1983009808
        %v948 = vunpack.c.0.s8 %v947
        %v949 = vlaneseq
        %v950 = vshrl.u32 %v949, 7
        %v951 = vsub.s32 %v948, %v950
        %v952 = vrot.slane %v938, %v951
        %v953 = vcombine.high %v945, %v945
        %v954 = vcombine.high %v952, %v952
        %v955 = vcombine.high %v875, %v875
        %v957 = vunpack.c.l.s4 1983009808
        %v958 = vunpack.c.0.s8 %v957
        %v959 = vlaneseq
        %v960 = vshrl.u32 %v959, 7
        %v961 = vsub.s32 %v958, %v960
        %v962 = vrot.slane %v875, %v961
        %v964 = vunpack.c.l.s4 1983009808
        %v965 = vunpack.c.0.s8 %v964
        %v966 = vlaneseq
        %v967 = vshrl.u32 %v966, 7
        %v968 = vsub.s32 %v965, %v967
        %v969 = vrot.slane %v955, %v968
        %v970 = vcombine.high %v962, %v962
        %v971 = vcombine.high %v969, %v969
        %v972 = vcombine.high %v876, %v876
        %v974 = vunpack.c.l.s4 1983009808
        %v975 = vunpack.c.0.s8 %v974
        %v976 = vlaneseq
        %v977 = vshrl.u32 %v976, 7
        %v978 = vsub.s32 %v975, %v977
        %v979 = vrot.slane %v876, %v978
        %v981 = vunpack.c.l.s4 1983009808
        %v982 = vunpack.c.0.s8 %v981
        %v983 = vlaneseq
        %v984 = vshrl.u32 %v983, 7
        %v985 = vsub.s32 %v982, %v984
        %v986 = vrot.slane %v972, %v985
        %v987 = vcombine.high %v979, %v979
        %v988 = vcombine.high %v986, %v986
        %v989 = vcombine.high %v877, %v877
        %v991 = vunpack.c.l.s4 1983009808
        %v992 = vunpack.c.0.s8 %v991
        %v993 = vlaneseq
        %v994 = vshrl.u32 %v993, 7
        %v995 = vsub.s32 %v992, %v994
        %v996 = vrot.slane %v877, %v995
        %v998 = vunpack.c.l.s4 1983009808
        %v999 = vunpack.c.0.s8 %v998
        %v1000 = vlaneseq
        %v1001 = vshrl.u32 %v1000, 7
        %v1002 = vsub.s32 %v999, %v1001
        %v1003 = vrot.slane %v989, %v1002
        %v1004 = vcombine.high %v996, %v996
        %v1005 = vcombine.high %v1003, %v1003
        %v1006 = vcombine.high %v878, %v878
        %v1008 = vunpack.c.l.s4 1983009808
        %v1009 = vunpack.c.0.s8 %v1008
        %v1010 = vlaneseq
        %v1011 = vshrl.u32 %v1010, 7
        %v1012 = vsub.s32 %v1009, %v1011
        %v1013 = vrot.slane %v878, %v1012
        %v1015 = vunpack.c.l.s4 1983009808
        %v1016 = vunpack.c.0.s8 %v1015
        %v1017 = vlaneseq
        %v1018 = vshrl.u32 %v1017, 7
        %v1019 = vsub.s32 %v1016, %v1018
        %v1020 = vrot.slane %v1006, %v1019
        %v1021 = vcombine.high %v1013, %v1013
        %v1022 = vcombine.high %v1020, %v1020
        %v1055 = vrot.slane %v894, 7
        %v1056 = vrot.slane %v1055, 2
        %v1057 = vrot.slane %v902, 7
        %v1058 = vrot.slane %v1057, 2
        %v1059 = vrot.slane %v901, 7
        %v1060 = vrot.slane %v1059, 2
        %v1061 = vrot.slane %v903, 7
        %v1062 = vrot.slane %v1061, 2
        %v1063 = vrot.slane %v911, 7
        %v1064 = vrot.slane %v1063, 2
        %v1065 = vrot.slane %v919, 7
        %v1066 = vrot.slane %v1065, 2
        %v1067 = vrot.slane %v918, 7
        %v1068 = vrot.slane %v1067, 2
        %v1069 = vrot.slane %v920, 7
        %v1070 = vrot.slane %v1069, 2
        %v1071 = vrot.slane %v928, 7
        %v1072 = vrot.slane %v1071, 2
        %v1073 = vrot.slane %v936, 7
        %v1074 = vrot.slane %v1073, 2
        %v1075 = vrot.slane %v935, 7
        %v1076 = vrot.slane %v1075, 2
        %v1077 = vrot.slane %v937, 7
        %v1078 = vrot.slane %v1077, 2
        %v1079 = vrot.slane %v945, 7
        %v1080 = vrot.slane %v1079, 2
        %v1081 = vrot.slane %v953, 7
        %v1082 = vrot.slane %v1081, 2
        %v1083 = vrot.slane %v952, 7
        %v1084 = vrot.slane %v1083, 2
        %v1085 = vrot.slane %v954, 7
        %v1086 = vrot.slane %v1085, 2
        %v1087 = vrot.slane %v962, 7
        %v1088 = vrot.slane %v1087, 2
        %v1089 = vrot.slane %v970, 7
        %v1090 = vrot.slane %v1089, 2
        %v1091 = vrot.slane %v969, 7
        %v1092 = vrot.slane %v1091, 2
        %v1093 = vrot.slane %v971, 7
        %v1094 = vrot.slane %v1093, 2
        %v1095 = vrot.slane %v979, 7
        %v1096 = vrot.slane %v1095, 2
        %v1097 = vrot.slane %v987, 7
        %v1098 = vrot.slane %v1097, 2
        %v1099 = vrot.slane %v986, 7
        %v1100 = vrot.slane %v1099, 2
        %v1101 = vrot.slane %v988, 7
        %v1102 = vrot.slane %v1101, 2
        %v1103 = vrot.slane %v996, 7
        %v1104 = vrot.slane %v1103, 2
        %v1105 = vrot.slane %v1004, 7
        %v1106 = vrot.slane %v1105, 2
        %v1107 = vrot.slane %v1003, 7
        %v1108 = vrot.slane %v1107, 2
        %v1109 = vrot.slane %v1005, 7
        %v1110 = vrot.slane %v1109, 2
        %v1111 = vrot.slane %v1013, 7
        %v1112 = vrot.slane %v1111, 2
        %v1113 = vrot.slane %v1021, 7
        %v1114 = vrot.slane %v1113, 2
        %v1115 = vrot.slane %v1020, 7
        %v1116 = vrot.slane %v1115, 2
        %v1117 = vrot.slane %v1022, 7
        %v1118 = vrot.slane %v1117, 2
        %v1151 = vmax.f32 %v894, %v1056
        %v1152 = vmax.f32 %v902, %v1058
        %v1153 = vmax.f32 %v901, %v1060
        %v1154 = vmax.f32 %v903, %v1062
        %v1155 = vmax.f32 %v911, %v1064
        %v1156 = vmax.f32 %v919, %v1066
        %v1157 = vmax.f32 %v918, %v1068
        %v1158 = vmax.f32 %v920, %v1070
        %v1159 = vmax.f32 %v928, %v1072
        %v1160 = vmax.f32 %v936, %v1074
        %v1161 = vmax.f32 %v935, %v1076
        %v1162 = vmax.f32 %v937, %v1078
        %v1163 = vmax.f32 %v945, %v1080
        %v1164 = vmax.f32 %v953, %v1082
        %v1165 = vmax.f32 %v952, %v1084
        %v1166 = vmax.f32 %v954, %v1086
        %v1167 = vmax.f32 %v962, %v1088
        %v1168 = vmax.f32 %v970, %v1090
        %v1169 = vmax.f32 %v969, %v1092
        %v1170 = vmax.f32 %v971, %v1094
        %v1171 = vmax.f32 %v979, %v1096
        %v1172 = vmax.f32 %v987, %v1098
        %v1173 = vmax.f32 %v986, %v1100
        %v1174 = vmax.f32 %v988, %v1102
        %v1175 = vmax.f32 %v996, %v1104
        %v1176 = vmax.f32 %v1004, %v1106
        %v1177 = vmax.f32 %v1003, %v1108
        %v1178 = vmax.f32 %v1005, %v1110
        %v1179 = vmax.f32 %v1013, %v1112
        %v1180 = vmax.f32 %v1021, %v1114
        %v1181 = vmax.f32 %v1020, %v1116
        %v1182 = vmax.f32 %v1022, %v1118
        %1183 = vst [vmem:[#allocation2] sm:$0x1] 0.0
        %1184 = vst [vmem:[#allocation2 + $0x10] sm:$0x1] 0.0
        %1185 = vst [vmem:[#allocation2 + $0x20] sm:$0x1] 0.0
        %1186 = vst [vmem:[#allocation2 + $0x30] sm:$0x1] 0.0
        %1187 = vst [vmem:[#allocation2 + $0x9] sm:$0x1] 0.0
        %1188 = vst [vmem:[#allocation2 + $0x19] sm:$0x1] 0.0
        %1189 = vst [vmem:[#allocation2 + $0x29] sm:$0x1] 0.0
        %1190 = vst [vmem:[#allocation2 + $0x39] sm:$0x1] 0.0
        %v1223 = vlaneseq
        %v1224 = vshrl.u32 %v1223, 7
        %v1225 = vsub.s32 0, %v1224
        %v1226 = vrot.slane %v1151, %v1225
        %v1227 = vlaneseq
        %v1228 = vshrl.u32 %v1227, 7
        %v1229 = vsub.s32 0, %v1228
        %v1230 = vrot.slane %v1152, %v1229
        %v1231 = vlaneseq
        %v1232 = vshrl.u32 %v1231, 7
        %v1233 = vsub.s32 0, %v1232
        %v1234 = vrot.slane %v1153, %v1233
        %v1235 = vlaneseq
        %v1236 = vshrl.u32 %v1235, 7
        %v1237 = vsub.s32 0, %v1236
        %v1238 = vrot.slane %v1154, %v1237
        %v1239 = vlaneseq
        %v1240 = vshrl.u32 %v1239, 7
        %v1241 = vsub.s32 0, %v1240
        %v1242 = vrot.slane %v1155, %v1241
        %v1243 = vlaneseq
        %v1244 = vshrl.u32 %v1243, 7
        %v1245 = vsub.s32 0, %v1244
        %v1246 = vrot.slane %v1156, %v1245
        %v1247 = vlaneseq
        %v1248 = vshrl.u32 %v1247, 7
        %v1249 = vsub.s32 0, %v1248
        %v1250 = vrot.slane %v1157, %v1249
        %v1251 = vlaneseq
        %v1252 = vshrl.u32 %v1251, 7
        %v1253 = vsub.s32 0, %v1252
        %v1254 = vrot.slane %v1158, %v1253
        %v1255 = vlaneseq
        %v1256 = vshrl.u32 %v1255, 7
        %v1257 = vsub.s32 0, %v1256
        %v1258 = vrot.slane %v1159, %v1257
        %v1259 = vlaneseq
        %v1260 = vshrl.u32 %v1259, 7
        %v1261 = vsub.s32 0, %v1260
        %v1262 = vrot.slane %v1160, %v1261
        %v1263 = vlaneseq
        %v1264 = vshrl.u32 %v1263, 7
        %v1265 = vsub.s32 0, %v1264
        %v1266 = vrot.slane %v1161, %v1265
        %v1267 = vlaneseq
        %v1268 = vshrl.u32 %v1267, 7
        %v1269 = vsub.s32 0, %v1268
        %v1270 = vrot.slane %v1162, %v1269
        %v1271 = vlaneseq
        %v1272 = vshrl.u32 %v1271, 7
        %v1273 = vsub.s32 0, %v1272
        %v1274 = vrot.slane %v1163, %v1273
        %v1275 = vlaneseq
        %v1276 = vshrl.u32 %v1275, 7
        %v1277 = vsub.s32 0, %v1276
        %v1278 = vrot.slane %v1164, %v1277
        %v1279 = vlaneseq
        %v1280 = vshrl.u32 %v1279, 7
        %v1281 = vsub.s32 0, %v1280
        %v1282 = vrot.slane %v1165, %v1281
        %v1283 = vlaneseq
        %v1284 = vshrl.u32 %v1283, 7
        %v1285 = vsub.s32 0, %v1284
        %v1286 = vrot.slane %v1166, %v1285
        %v1287 = vlaneseq
        %v1288 = vshrl.u32 %v1287, 7
        %v1289 = vsub.s32 0, %v1288
        %v1290 = vrot.slane %v1167, %v1289
        %v1291 = vlaneseq
        %v1292 = vshrl.u32 %v1291, 7
        %v1293 = vsub.s32 0, %v1292
        %v1294 = vrot.slane %v1168, %v1293
        %v1295 = vlaneseq
        %v1296 = vshrl.u32 %v1295, 7
        %v1297 = vsub.s32 0, %v1296
        %v1298 = vrot.slane %v1169, %v1297
        %v1299 = vlaneseq
        %v1300 = vshrl.u32 %v1299, 7
        %v1301 = vsub.s32 0, %v1300
        %v1302 = vrot.slane %v1170, %v1301
        %v1303 = vlaneseq
        %v1304 = vshrl.u32 %v1303, 7
        %v1305 = vsub.s32 0, %v1304
        %v1306 = vrot.slane %v1171, %v1305
        %v1307 = vlaneseq
        %v1308 = vshrl.u32 %v1307, 7
        %v1309 = vsub.s32 0, %v1308
        %v1310 = vrot.slane %v1172, %v1309
        %v1311 = vlaneseq
        %v1312 = vshrl.u32 %v1311, 7
        %v1313 = vsub.s32 0, %v1312
        %v1314 = vrot.slane %v1173, %v1313
        %v1315 = vlaneseq
        %v1316 = vshrl.u32 %v1315, 7
        %v1317 = vsub.s32 0, %v1316
        %v1318 = vrot.slane %v1174, %v1317
        %v1319 = vlaneseq
        %v1320 = vshrl.u32 %v1319, 7
        %v1321 = vsub.s32 0, %v1320
        %v1322 = vrot.slane %v1175, %v1321
        %v1323 = vlaneseq
        %v1324 = vshrl.u32 %v1323, 7
        %v1325 = vsub.s32 0, %v1324
        %v1326 = vrot.slane %v1176, %v1325
        %v1327 = vlaneseq
        %v1328 = vshrl.u32 %v1327, 7
        %v1329 = vsub.s32 0, %v1328
        %v1330 = vrot.slane %v1177, %v1329
        %v1331 = vlaneseq
        %v1332 = vshrl.u32 %v1331, 7
        %v1333 = vsub.s32 0, %v1332
        %v1334 = vrot.slane %v1178, %v1333
        %v1335 = vlaneseq
        %v1336 = vshrl.u32 %v1335, 7
        %v1337 = vsub.s32 0, %v1336
        %v1338 = vrot.slane %v1179, %v1337
        %v1339 = vlaneseq
        %v1340 = vshrl.u32 %v1339, 7
        %v1341 = vsub.s32 0, %v1340
        %v1342 = vrot.slane %v1180, %v1341
        %v1343 = vlaneseq
        %v1344 = vshrl.u32 %v1343, 7
        %v1345 = vsub.s32 0, %v1344
        %v1346 = vrot.slane %v1181, %v1345
        %v1347 = vlaneseq
        %v1348 = vshrl.u32 %v1347, 7
        %v1349 = vsub.s32 0, %v1348
        %v1350 = vrot.slane %v1182, %v1349
        %vm1351 = vcmask 1041409
        %v1352 = vsel %vm1351, %v1230, %v1226
        %vm1353 = vcmask 1042434
        %v1354 = vsel %vm1353, %v1234, %v1352
        %vm1355 = vcmask 1043459
        %v1356 = vsel %vm1355, %v1238, %v1354
        %vm1357 = vcmask 1044484
        %v1358 = vsel %vm1357, %v1242, %v1356
        %vm1359 = vcmask 1045509
        %v1360 = vsel %vm1359, %v1246, %v1358
        %vm1361 = vcmask 1046534
        %v1362 = vsel %vm1361, %v1250, %v1360
        %vm1363 = vcmask 1047559
        %v1364 = vsel %vm1363, %v1254, %v1362
        %v1365 = vsel %vm1351, %v1262, %v1258
        %v1366 = vsel %vm1353, %v1266, %v1365
        %v1367 = vsel %vm1355, %v1270, %v1366
        %v1368 = vsel %vm1357, %v1274, %v1367
        %v1369 = vsel %vm1359, %v1278, %v1368
        %v1370 = vsel %vm1361, %v1282, %v1369
        %v1371 = vsel %vm1363, %v1286, %v1370
        %v1372 = vsel %vm1351, %v1294, %v1290
        %v1373 = vsel %vm1353, %v1298, %v1372
        %v1374 = vsel %vm1355, %v1302, %v1373
        %v1375 = vsel %vm1357, %v1306, %v1374
        %v1376 = vsel %vm1359, %v1310, %v1375
        %v1377 = vsel %vm1361, %v1314, %v1376
        %v1378 = vsel %vm1363, %v1318, %v1377
        %v1379 = vsel %vm1351, %v1326, %v1322
        %v1380 = vsel %vm1353, %v1330, %v1379
        %v1381 = vsel %vm1355, %v1334, %v1380
        %v1382 = vsel %vm1357, %v1338, %v1381
        %v1383 = vsel %vm1359, %v1342, %v1382
        %v1384 = vsel %vm1361, %v1346, %v1383
        %v1385 = vsel %vm1363, %v1350, %v1384
        %1390 = vst [vmem:[#allocation2 + $0x1] sm:$0xff] %v1364
        %1391 = vst [vmem:[#allocation2 + $0x11] sm:$0xff] %v1371
        %1392 = vst [vmem:[#allocation2 + $0x21] sm:$0xff] %v1378
        %1393 = vst [vmem:[#allocation2 + $0x31] sm:$0xff] %v1385
        %v1394 = vld [vmem:[#allocation2] sm:$0xff]
        %v1395 = vld [vmem:[#allocation2 + $0x10] sm:$0xff]
        %v1396 = vld [vmem:[#allocation2 + $0x20] sm:$0xff]
        %v1397 = vld [vmem:[#allocation2 + $0x30] sm:$0xff]
        %v1398 = vld [vmem:[%s3] sm:$0xff]
        %v1399 = vld [vmem:[%s3 + $0x8] sm:$0xff]
        %v1400 = vld [vmem:[%s3 + $0x10] sm:$0xff]
        %v1401 = vld [vmem:[%s3 + $0x18] sm:$0xff]
        %v1402 = vld [vmem:[%s3 + $0x20] sm:$0xff]
        %v1403 = vld [vmem:[%s3 + $0x28] sm:$0xff]
        %v1404 = vld [vmem:[%s3 + $0x30] sm:$0xff]
        %v1405 = vld [vmem:[%s3 + $0x38] sm:$0xff]
        %v1406 = vld [vmem:[%s3 + $0x40] sm:$0xff]
        %v1407 = vld [vmem:[%s3 + $0x48] sm:$0xff]
        %v1408 = vld [vmem:[%s3 + $0x50] sm:$0xff]
        %v1409 = vld [vmem:[%s3 + $0x58] sm:$0xff]
        %v1410 = vld [vmem:[%s3 + $0x60] sm:$0xff]
        %v1411 = vld [vmem:[%s3 + $0x68] sm:$0xff]
        %v1412 = vld [vmem:[%s3 + $0x70] sm:$0xff]
        %v1413 = vld [vmem:[%s3 + $0x78] sm:$0xff]
        %v1414 = vld [vmem:[%s3 + $0x80] sm:$0xff]
        %v1415 = vld [vmem:[%s3 + $0x88] sm:$0xff]
        %v1416 = vld [vmem:[%s3 + $0x90] sm:$0xff]
        %v1417 = vld [vmem:[%s3 + $0x98] sm:$0xff]
        %v1418 = vld [vmem:[%s3 + $0xa0] sm:$0xff]
        %v1419 = vld [vmem:[%s3 + $0xa8] sm:$0xff]
        %v1420 = vld [vmem:[%s3 + $0xb0] sm:$0xff]
        %v1421 = vld [vmem:[%s3 + $0xb8] sm:$0xff]
        %v1422 = vld [vmem:[%s3 + $0xc0] sm:$0xff]
        %v1423 = vld [vmem:[%s3 + $0xc8] sm:$0xff]
        %v1424 = vld [vmem:[%s3 + $0xd0] sm:$0xff]
        %v1425 = vld [vmem:[%s3 + $0xd8] sm:$0xff]
        %v1426 = vld [vmem:[%s3 + $0xe0] sm:$0xff]
        %v1427 = vld [vmem:[%s3 + $0xe8] sm:$0xff]
        %v1428 = vld [vmem:[%s3 + $0xf0] sm:$0xff]
        %v1429 = vld [vmem:[%s3 + $0xf8] sm:$0xff]
        %v1430 = vld [vmem:[#allocation2 + $0x1] sm:$0xff]
        %v1431 = vld [vmem:[#allocation2 + $0x11] sm:$0xff]
        %v1432 = vld [vmem:[#allocation2 + $0x21] sm:$0xff]
        %v1433 = vld [vmem:[#allocation2 + $0x31] sm:$0xff]
        %s1434 = scalar_lea.vmem %s3, 256
        %v1435 = vld [vmem:[%s1434] sm:$0xff]
        %v1436 = vld [vmem:[%s1434 + $0x8] sm:$0xff]
        %v1437 = vld [vmem:[%s1434 + $0x10] sm:$0xff]
        %v1438 = vld [vmem:[%s1434 + $0x18] sm:$0xff]
        %v1439 = vld [vmem:[%s1434 + $0x20] sm:$0xff]
        %v1440 = vld [vmem:[%s1434 + $0x28] sm:$0xff]
        %v1441 = vld [vmem:[%s1434 + $0x30] sm:$0xff]
        %v1442 = vld [vmem:[%s1434 + $0x38] sm:$0xff]
        %v1443 = vld [vmem:[%s1434 + $0x40] sm:$0xff]
        %v1444 = vld [vmem:[%s1434 + $0x48] sm:$0xff]
        %v1445 = vld [vmem:[%s1434 + $0x50] sm:$0xff]
        %v1446 = vld [vmem:[%s1434 + $0x58] sm:$0xff]
        %v1447 = vld [vmem:[%s1434 + $0x60] sm:$0xff]
        %v1448 = vld [vmem:[%s1434 + $0x68] sm:$0xff]
        %v1449 = vld [vmem:[%s1434 + $0x70] sm:$0xff]
        %v1450 = vld [vmem:[%s1434 + $0x78] sm:$0xff]
        %v1451 = vld [vmem:[%s1434 + $0x80] sm:$0xff]
        %v1452 = vld [vmem:[%s1434 + $0x88] sm:$0xff]
        %v1453 = vld [vmem:[%s1434 + $0x90] sm:$0xff]
        %v1454 = vld [vmem:[%s1434 + $0x98] sm:$0xff]
        %v1455 = vld [vmem:[%s1434 + $0xa0] sm:$0xff]
        %v1456 = vld [vmem:[%s1434 + $0xa8] sm:$0xff]
        %v1457 = vld [vmem:[%s1434 + $0xb0] sm:$0xff]
        %v1458 = vld [vmem:[%s1434 + $0xb8] sm:$0xff]
        %v1459 = vld [vmem:[%s1434 + $0xc0] sm:$0xff]
        %v1460 = vld [vmem:[%s1434 + $0xc8] sm:$0xff]
        %v1461 = vld [vmem:[%s1434 + $0xd0] sm:$0xff]
        %v1462 = vld [vmem:[%s1434 + $0xd8] sm:$0xff]
        %v1463 = vld [vmem:[%s1434 + $0xe0] sm:$0xff]
        %v1464 = vld [vmem:[%s1434 + $0xe8] sm:$0xff]
        %v1465 = vld [vmem:[%s1434 + $0xf0] sm:$0xff]
        %v1466 = vld [vmem:[%s1434 + $0xf8] sm:$0xff]
        %1467 = vmatprep.subr.mxu0 %v1466
        %1468 = vmatpush1.msra.mxu0 %v1465
        %1469 = vmatprep.subr.mxu0 %v1464
        %1470 = vmatpush1.msra.mxu0 %v1463
        %1471 = vmatprep.subr.mxu0 %v1462
        %1472 = vmatpush1.msra.mxu0 %v1461
        %1473 = vmatprep.subr.mxu0 %v1460
        %1474 = vmatpush1.msra.mxu0 %v1459
        %1475 = vmatprep.subr.mxu0 %v1458
        %1476 = vmatpush1.msra.mxu0 %v1457
        %1477 = vmatprep.subr.mxu0 %v1456
        %1478 = vmatpush1.msra.mxu0 %v1455
        %1479 = vmatprep.subr.mxu0 %v1454
        %1480 = vmatpush1.msra.mxu0 %v1453
        %1481 = vmatprep.subr.mxu0 %v1452
        %1482 = vmatpush1.msra.mxu0 %v1451
        %1483 = vmatprep.subr.mxu0 %v1450
        %1484 = vmatpush1.msra.mxu0 %v1449
        %1485 = vmatprep.subr.mxu0 %v1448
        %1486 = vmatpush1.msra.mxu0 %v1447
        %1487 = vmatprep.subr.mxu0 %v1446
        %1488 = vmatpush1.msra.mxu0 %v1445
        %1489 = vmatprep.subr.mxu0 %v1444
        %1490 = vmatpush1.msra.mxu0 %v1443
        %1491 = vmatprep.subr.mxu0 %v1442
        %1492 = vmatpush1.msra.mxu0 %v1441
        %1493 = vmatprep.subr.mxu0 %v1440
        %1494 = vmatpush1.msra.mxu0 %v1439
        %1495 = vmatprep.subr.mxu0 %v1438
        %1496 = vmatpush1.msra.mxu0 %v1437
        %1497 = vmatprep.subr.mxu0 %v1436
        %1498 = vmatpush1.msra.mxu0 %v1435
        %1499 = vmatprep.subr.mxu0 0.0
        %1500 = vmatpush2.msra.mxu0 0.0
        %1501 = vmatprep.subr.mxu0 0.0
        %1502 = vmatpush2.msra.mxu0 0.0
        %1503 = vmatprep.subr.mxu0 0.0
        %1504 = vmatpush2.msra.mxu0 0.0
        %1505 = vmatprep.subr.mxu0 0.0
        %1506 = vmatpush2.msra.mxu0 0.0
        %1507 = vmatprep.subr.mxu0 0.0
        %1508 = vmatpush2.msra.mxu0 0.0
        %1509 = vmatprep.subr.mxu0 0.0
        %1510 = vmatpush2.msra.mxu0 0.0
        %1511 = vmatprep.subr.mxu0 0.0
        %1512 = vmatpush2.msra.mxu0 0.0
        %1513 = vmatprep.subr.mxu0 0.0
        %1514 = vmatpush2.msra.mxu0 0.0
        %1515 = vmatprep.subr.mxu0 0.0
        %1516 = vmatpush2.msra.mxu0 0.0
        %1517 = vmatprep.subr.mxu0 0.0
        %1518 = vmatpush2.msra.mxu0 0.0
        %1519 = vmatprep.subr.mxu0 0.0
        %1520 = vmatpush2.msra.mxu0 0.0
        %1521 = vmatprep.subr.mxu0 0.0
        %1522 = vmatpush2.msra.mxu0 0.0
        %1523 = vmatprep.subr.mxu0 0.0
        %1524 = vmatpush2.msra.mxu0 0.0
        %1525 = vmatprep.subr.mxu0 0.0
        %1526 = vmatpush2.msra.mxu0 0.0
        %1527 = vmatprep.subr.mxu0 0.0
        %1528 = vmatpush2.msra.mxu0 0.0
        %1529 = vmatprep.subr.mxu0 0.0
        %1530 = vmatpush2.msra.mxu0 0.0
        %1531 = vmatprep.mubr.f32.mxu0 0.0
        %1532 = vmatmul.mubr.f32.gmra.mxu0 %v1430
        %v1533 = vpop.f32.mrf.mxu0
        %v1534 = vadd.f32 0.0, %v1533
        %v1535 = vpop.f32.mrf.mxu0
        %v1536 = vadd.f32 0.0, %v1535
        %1537 = vmatprep.mubr.f32.mxu0 0.0
        %1538 = vmatmul.mubr.f32.gmra.mxu0 %v1431
        %v1539 = vpop.f32.mrf.mxu0
        %v1540 = vadd.f32 0.0, %v1539
        %v1541 = vpop.f32.mrf.mxu0
        %v1542 = vadd.f32 0.0, %v1541
        %1543 = vmatprep.mubr.f32.mxu0 0.0
        %1544 = vmatmul.mubr.f32.gmra.mxu0 %v1432
        %v1545 = vpop.f32.mrf.mxu0
        %v1546 = vadd.f32 0.0, %v1545
        %v1547 = vpop.f32.mrf.mxu0
        %v1548 = vadd.f32 0.0, %v1547
        %1549 = vmatprep.mubr.f32.mxu0 0.0
        %1550 = vmatmul.mubr.f32.gmra.mxu0 %v1433
        %v1551 = vpop.f32.mrf.mxu0
        %v1552 = vadd.f32 0.0, %v1551
        %v1553 = vpop.f32.mrf.mxu0
        %v1554 = vadd.f32 0.0, %v1553
        %1555 = vdwg.mxu0
        %1556 = vmatprep.subr.mxu0 %v1429
        %1557 = vmatpush1.msra.mxu0 %v1428
        %1558 = vmatprep.subr.mxu0 %v1427
        %1559 = vmatpush1.msra.mxu0 %v1426
        %1560 = vmatprep.subr.mxu0 %v1425
        %1561 = vmatpush1.msra.mxu0 %v1424
        %1562 = vmatprep.subr.mxu0 %v1423
        %1563 = vmatpush1.msra.mxu0 %v1422
        %1564 = vmatprep.subr.mxu0 %v1421
        %1565 = vmatpush1.msra.mxu0 %v1420
        %1566 = vmatprep.subr.mxu0 %v1419
        %1567 = vmatpush1.msra.mxu0 %v1418
        %1568 = vmatprep.subr.mxu0 %v1417
        %1569 = vmatpush1.msra.mxu0 %v1416
        %1570 = vmatprep.subr.mxu0 %v1415
        %1571 = vmatpush1.msra.mxu0 %v1414
        %1572 = vmatprep.subr.mxu0 %v1413
        %1573 = vmatpush1.msra.mxu0 %v1412
        %1574 = vmatprep.subr.mxu0 %v1411
        %1575 = vmatpush1.msra.mxu0 %v1410
        %1576 = vmatprep.subr.mxu0 %v1409
        %1577 = vmatpush1.msra.mxu0 %v1408
        %1578 = vmatprep.subr.mxu0 %v1407
        %1579 = vmatpush1.msra.mxu0 %v1406
        %1580 = vmatprep.subr.mxu0 %v1405
        %1581 = vmatpush1.msra.mxu0 %v1404
        %1582 = vmatprep.subr.mxu0 %v1403
        %1583 = vmatpush1.msra.mxu0 %v1402
        %1584 = vmatprep.subr.mxu0 %v1401
        %1585 = vmatpush1.msra.mxu0 %v1400
        %1586 = vmatprep.subr.mxu0 %v1399
        %1587 = vmatpush1.msra.mxu0 %v1398
        %1588 = vmatprep.subr.mxu0 0.0
        %1589 = vmatpush2.msra.mxu0 0.0
        %1590 = vmatprep.subr.mxu0 0.0
        %1591 = vmatpush2.msra.mxu0 0.0
        %1592 = vmatprep.subr.mxu0 0.0
        %1593 = vmatpush2.msra.mxu0 0.0
        %1594 = vmatprep.subr.mxu0 0.0
        %1595 = vmatpush2.msra.mxu0 0.0
        %1596 = vmatprep.subr.mxu0 0.0
        %1597 = vmatpush2.msra.mxu0 0.0
        %1598 = vmatprep.subr.mxu0 0.0
        %1599 = vmatpush2.msra.mxu0 0.0
        %1600 = vmatprep.subr.mxu0 0.0
        %1601 = vmatpush2.msra.mxu0 0.0
        %1602 = vmatprep.subr.mxu0 0.0
        %1603 = vmatpush2.msra.mxu0 0.0
        %1604 = vmatprep.subr.mxu0 0.0
        %1605 = vmatpush2.msra.mxu0 0.0
        %1606 = vmatprep.subr.mxu0 0.0
        %1607 = vmatpush2.msra.mxu0 0.0
        %1608 = vmatprep.subr.mxu0 0.0
        %1609 = vmatpush2.msra.mxu0 0.0
        %1610 = vmatprep.subr.mxu0 0.0
        %1611 = vmatpush2.msra.mxu0 0.0
        %1612 = vmatprep.subr.mxu0 0.0
        %1613 = vmatpush2.msra.mxu0 0.0
        %1614 = vmatprep.subr.mxu0 0.0
        %1615 = vmatpush2.msra.mxu0 0.0
        %1616 = vmatprep.subr.mxu0 0.0
        %1617 = vmatpush2.msra.mxu0 0.0
        %1618 = vmatprep.subr.mxu0 0.0
        %1619 = vmatpush2.msra.mxu0 0.0
        %1620 = vmatprep.mubr.f32.mxu0 0.0
        %1621 = vmatmul.mubr.f32.gmra.mxu0 %v1394
        %v1622 = vpop.f32.mrf.mxu0
        %v1623 = vadd.f32 %v1534, %v1622
        %v1624 = vpop.f32.mrf.mxu0
        %v1625 = vadd.f32 %v1536, %v1624
        %1626 = vmatprep.mubr.f32.mxu0 0.0
        %1627 = vmatmul.mubr.f32.gmra.mxu0 %v1395
        %v1628 = vpop.f32.mrf.mxu0
        %v1629 = vadd.f32 %v1540, %v1628
        %v1630 = vpop.f32.mrf.mxu0
        %v1631 = vadd.f32 %v1542, %v1630
        %1632 = vmatprep.mubr.f32.mxu0 0.0
        %1633 = vmatmul.mubr.f32.gmra.mxu0 %v1396
        %v1634 = vpop.f32.mrf.mxu0
        %v1635 = vadd.f32 %v1546, %v1634
        %v1636 = vpop.f32.mrf.mxu0
        %v1637 = vadd.f32 %v1548, %v1636
        %1638 = vmatprep.mubr.f32.mxu0 0.0
        %1639 = vmatmul.mubr.f32.gmra.mxu0 %v1397
        %v1640 = vpop.f32.mrf.mxu0
        %v1641 = vadd.f32 %v1552, %v1640
        %v1642 = vpop.f32.mrf.mxu0
        %v1643 = vadd.f32 %v1554, %v1642
        %1644 = vdwg.mxu0
        %v1645 = vld [vmem:[#allocation2 + $0x2] sm:$0xff]
        %v1646 = vld [vmem:[#allocation2 + $0x12] sm:$0xff]
        %v1647 = vld [vmem:[#allocation2 + $0x22] sm:$0xff]
        %v1648 = vld [vmem:[#allocation2 + $0x32] sm:$0xff]
        %s1649 = scalar_lea.vmem %s3, 512
        %v1650 = vld [vmem:[%s1649] sm:$0xff]
        %v1651 = vld [vmem:[%s1649 + $0x8] sm:$0xff]
        %v1652 = vld [vmem:[%s1649 + $0x10] sm:$0xff]
        %v1653 = vld [vmem:[%s1649 + $0x18] sm:$0xff]
        %v1654 = vld [vmem:[%s1649 + $0x20] sm:$0xff]
        %v1655 = vld [vmem:[%s1649 + $0x28] sm:$0xff]
        %v1656 = vld [vmem:[%s1649 + $0x30] sm:$0xff]
        %v1657 = vld [vmem:[%s1649 + $0x38] sm:$0xff]
        %v1658 = vld [vmem:[%s1649 + $0x40] sm:$0xff]
        %v1659 = vld [vmem:[%s1649 + $0x48] sm:$0xff]
        %v1660 = vld [vmem:[%s1649 + $0x50] sm:$0xff]
        %v1661 = vld [vmem:[%s1649 + $0x58] sm:$0xff]
        %v1662 = vld [vmem:[%s1649 + $0x60] sm:$0xff]
        %v1663 = vld [vmem:[%s1649 + $0x68] sm:$0xff]
        %v1664 = vld [vmem:[%s1649 + $0x70] sm:$0xff]
        %v1665 = vld [vmem:[%s1649 + $0x78] sm:$0xff]
        %v1666 = vld [vmem:[%s1649 + $0x80] sm:$0xff]
        %v1667 = vld [vmem:[%s1649 + $0x88] sm:$0xff]
        %v1668 = vld [vmem:[%s1649 + $0x90] sm:$0xff]
        %v1669 = vld [vmem:[%s1649 + $0x98] sm:$0xff]
        %v1670 = vld [vmem:[%s1649 + $0xa0] sm:$0xff]
        %v1671 = vld [vmem:[%s1649 + $0xa8] sm:$0xff]
        %v1672 = vld [vmem:[%s1649 + $0xb0] sm:$0xff]
        %v1673 = vld [vmem:[%s1649 + $0xb8] sm:$0xff]
        %v1674 = vld [vmem:[%s1649 + $0xc0] sm:$0xff]
        %v1675 = vld [vmem:[%s1649 + $0xc8] sm:$0xff]
        %v1676 = vld [vmem:[%s1649 + $0xd0] sm:$0xff]
        %v1677 = vld [vmem:[%s1649 + $0xd8] sm:$0xff]
        %v1678 = vld [vmem:[%s1649 + $0xe0] sm:$0xff]
        %v1679 = vld [vmem:[%s1649 + $0xe8] sm:$0xff]
        %v1680 = vld [vmem:[%s1649 + $0xf0] sm:$0xff]
        %v1681 = vld [vmem:[%s1649 + $0xf8] sm:$0xff]
        %1682 = vmatprep.subr.mxu0 %v1681
        %1683 = vmatpush1.msra.mxu0 %v1680
        %1684 = vmatprep.subr.mxu0 %v1679
        %1685 = vmatpush1.msra.mxu0 %v1678
        %1686 = vmatprep.subr.mxu0 %v1677
        %1687 = vmatpush1.msra.mxu0 %v1676
        %1688 = vmatprep.subr.mxu0 %v1675
        %1689 = vmatpush1.msra.mxu0 %v1674
        %1690 = vmatprep.subr.mxu0 %v1673
        %1691 = vmatpush1.msra.mxu0 %v1672
        %1692 = vmatprep.subr.mxu0 %v1671
        %1693 = vmatpush1.msra.mxu0 %v1670
        %1694 = vmatprep.subr.mxu0 %v1669
        %1695 = vmatpush1.msra.mxu0 %v1668
        %1696 = vmatprep.subr.mxu0 %v1667
        %1697 = vmatpush1.msra.mxu0 %v1666
        %1698 = vmatprep.subr.mxu0 %v1665
        %1699 = vmatpush1.msra.mxu0 %v1664
        %1700 = vmatprep.subr.mxu0 %v1663
        %1701 = vmatpush1.msra.mxu0 %v1662
        %1702 = vmatprep.subr.mxu0 %v1661
        %1703 = vmatpush1.msra.mxu0 %v1660
        %1704 = vmatprep.subr.mxu0 %v1659
        %1705 = vmatpush1.msra.mxu0 %v1658
        %1706 = vmatprep.subr.mxu0 %v1657
        %1707 = vmatpush1.msra.mxu0 %v1656
        %1708 = vmatprep.subr.mxu0 %v1655
        %1709 = vmatpush1.msra.mxu0 %v1654
        %1710 = vmatprep.subr.mxu0 %v1653
        %1711 = vmatpush1.msra.mxu0 %v1652
        %1712 = vmatprep.subr.mxu0 %v1651
        %1713 = vmatpush1.msra.mxu0 %v1650
        %1714 = vmatprep.subr.mxu0 0.0
        %1715 = vmatpush2.msra.mxu0 0.0
        %1716 = vmatprep.subr.mxu0 0.0
        %1717 = vmatpush2.msra.mxu0 0.0
        %1718 = vmatprep.subr.mxu0 0.0
        %1719 = vmatpush2.msra.mxu0 0.0
        %1720 = vmatprep.subr.mxu0 0.0
        %1721 = vmatpush2.msra.mxu0 0.0
        %1722 = vmatprep.subr.mxu0 0.0
        %1723 = vmatpush2.msra.mxu0 0.0
        %1724 = vmatprep.subr.mxu0 0.0
        %1725 = vmatpush2.msra.mxu0 0.0
        %1726 = vmatprep.subr.mxu0 0.0
        %1727 = vmatpush2.msra.mxu0 0.0
        %1728 = vmatprep.subr.mxu0 0.0
        %1729 = vmatpush2.msra.mxu0 0.0
        %1730 = vmatprep.subr.mxu0 0.0
        %1731 = vmatpush2.msra.mxu0 0.0
        %1732 = vmatprep.subr.mxu0 0.0
        %1733 = vmatpush2.msra.mxu0 0.0
        %1734 = vmatprep.subr.mxu0 0.0
        %1735 = vmatpush2.msra.mxu0 0.0
        %1736 = vmatprep.subr.mxu0 0.0
        %1737 = vmatpush2.msra.mxu0 0.0
        %1738 = vmatprep.subr.mxu0 0.0
        %1739 = vmatpush2.msra.mxu0 0.0
        %1740 = vmatprep.subr.mxu0 0.0
        %1741 = vmatpush2.msra.mxu0 0.0
        %1742 = vmatprep.subr.mxu0 0.0
        %1743 = vmatpush2.msra.mxu0 0.0
        %1744 = vmatprep.subr.mxu0 0.0
        %1745 = vmatpush2.msra.mxu0 0.0
        %1746 = vmatprep.mubr.f32.mxu0 0.0
        %1747 = vmatmul.mubr.f32.gmra.mxu0 %v1645
        %v1748 = vpop.f32.mrf.mxu0
        %v1749 = vadd.f32 0.0, %v1748
        %v1750 = vpop.f32.mrf.mxu0
        %v1751 = vadd.f32 0.0, %v1750
        %1752 = vmatprep.mubr.f32.mxu0 0.0
        %1753 = vmatmul.mubr.f32.gmra.mxu0 %v1646
        %v1754 = vpop.f32.mrf.mxu0
        %v1755 = vadd.f32 0.0, %v1754
        %v1756 = vpop.f32.mrf.mxu0
        %v1757 = vadd.f32 0.0, %v1756
        %1758 = vmatprep.mubr.f32.mxu0 0.0
        %1759 = vmatmul.mubr.f32.gmra.mxu0 %v1647
        %v1760 = vpop.f32.mrf.mxu0
        %v1761 = vadd.f32 0.0, %v1760
        %v1762 = vpop.f32.mrf.mxu0
        %v1763 = vadd.f32 0.0, %v1762
        %1764 = vmatprep.mubr.f32.mxu0 0.0
        %1765 = vmatmul.mubr.f32.gmra.mxu0 %v1648
        %v1766 = vpop.f32.mrf.mxu0
        %v1767 = vadd.f32 0.0, %v1766
        %v1768 = vpop.f32.mrf.mxu0
        %v1769 = vadd.f32 0.0, %v1768
        %1770 = vdwg.mxu0
        %v1771 = vadd.f32 %v1623, %v1749
        %v1772 = vadd.f32 %v1625, %v1751
        %v1773 = vadd.f32 %v1629, %v1755
        %v1774 = vadd.f32 %v1631, %v1757
        %v1775 = vadd.f32 %v1635, %v1761
        %v1776 = vadd.f32 %v1637, %v1763
        %v1777 = vadd.f32 %v1641, %v1767
        %v1778 = vadd.f32 %v1643, %v1769
        %v1779 = vld [vmem:[%s4] sm:$0x3]
        %v1781 = vlaneseq
        %v1782 = vshrl.u32 %v1781, 7
        %v1783 = vsub.s32 0, %v1782
        %v1784 = vrot.slane %v1779, %v1783
        %v1785 = vlaneseq
        %v1786 = vshrl.u32 %v1785, 7
        %v1787 = vsub.s32 1, %v1786
        %v1788 = vrot.slane %v1779, %v1787
        %v1791 = vadd.f32 %v1771, %v1784
        %v1792 = vadd.f32 %v1772, %v1788
        %v1793 = vadd.f32 %v1773, %v1784
        %v1794 = vadd.f32 %v1774, %v1788
        %v1795 = vadd.f32 %v1775, %v1784
        %v1796 = vadd.f32 %v1776, %v1788
        %v1797 = vadd.f32 %v1777, %v1784
        %v1798 = vadd.f32 %v1778, %v1788
        %v1799 = vmax.f32 %v1791, 0.0
        %v1800 = vmax.f32 %v1792, 0.0
        %v1801 = vmax.f32 %v1793, 0.0
        %v1802 = vmax.f32 %v1794, 0.0
        %v1803 = vmax.f32 %v1795, 0.0
        %v1804 = vmax.f32 %v1796, 0.0
        %v1805 = vmax.f32 %v1797, 0.0
        %v1806 = vmax.f32 %v1798, 0.0
        %v1807 = vmax.f32 %v1799, %v1800
        %v1808 = vmax.f32 %v1801, %v1802
        %v1809 = vmax.f32 %v1803, %v1804
        %v1810 = vmax.f32 %v1805, %v1806
        %v1815 = vcombine.high %v1807, %v1807
        %v1817 = vunpack.c.l.s4 1983009808
        %v1818 = vunpack.c.0.s8 %v1817
        %v1819 = vlaneseq
        %v1820 = vshrl.u32 %v1819, 7
        %v1821 = vsub.s32 %v1818, %v1820
        %v1822 = vrot.slane %v1807, %v1821
        %v1824 = vunpack.c.l.s4 1983009808
        %v1825 = vunpack.c.0.s8 %v1824
        %v1826 = vlaneseq
        %v1827 = vshrl.u32 %v1826, 7
        %v1828 = vsub.s32 %v1825, %v1827
        %v1829 = vrot.slane %v1815, %v1828
        %v1830 = vcombine.high %v1822, %v1822
        %v1831 = vcombine.high %v1829, %v1829
        %v1832 = vcombine.high %v1808, %v1808
        %v1834 = vunpack.c.l.s4 1983009808
        %v1835 = vunpack.c.0.s8 %v1834
        %v1836 = vlaneseq
        %v1837 = vshrl.u32 %v1836, 7
        %v1838 = vsub.s32 %v1835, %v1837
        %v1839 = vrot.slane %v1808, %v1838
        %v1841 = vunpack.c.l.s4 1983009808
        %v1842 = vunpack.c.0.s8 %v1841
        %v1843 = vlaneseq
        %v1844 = vshrl.u32 %v1843, 7
        %v1845 = vsub.s32 %v1842, %v1844
        %v1846 = vrot.slane %v1832, %v1845
        %v1847 = vcombine.high %v1839, %v1839
        %v1848 = vcombine.high %v1846, %v1846
        %v1849 = vcombine.high %v1809, %v1809
        %v1851 = vunpack.c.l.s4 1983009808
        %v1852 = vunpack.c.0.s8 %v1851
        %v1853 = vlaneseq
        %v1854 = vshrl.u32 %v1853, 7
        %v1855 = vsub.s32 %v1852, %v1854
        %v1856 = vrot.slane %v1809, %v1855
        %v1858 = vunpack.c.l.s4 1983009808
        %v1859 = vunpack.c.0.s8 %v1858
        %v1860 = vlaneseq
        %v1861 = vshrl.u32 %v1860, 7
        %v1862 = vsub.s32 %v1859, %v1861
        %v1863 = vrot.slane %v1849, %v1862
        %v1864 = vcombine.high %v1856, %v1856
        %v1865 = vcombine.high %v1863, %v1863
        %v1866 = vcombine.high %v1810, %v1810
        %v1868 = vunpack.c.l.s4 1983009808
        %v1869 = vunpack.c.0.s8 %v1868
        %v1870 = vlaneseq
        %v1871 = vshrl.u32 %v1870, 7
        %v1872 = vsub.s32 %v1869, %v1871
        %v1873 = vrot.slane %v1810, %v1872
        %v1875 = vunpack.c.l.s4 1983009808
        %v1876 = vunpack.c.0.s8 %v1875
        %v1877 = vlaneseq
        %v1878 = vshrl.u32 %v1877, 7
        %v1879 = vsub.s32 %v1876, %v1878
        %v1880 = vrot.slane %v1866, %v1879
        %v1881 = vcombine.high %v1873, %v1873
        %v1882 = vcombine.high %v1880, %v1880
        %v1899 = vrot.slane %v1822, 7
        %v1900 = vrot.slane %v1899, 2
        %v1901 = vrot.slane %v1830, 7
        %v1902 = vrot.slane %v1901, 2
        %v1903 = vrot.slane %v1829, 7
        %v1904 = vrot.slane %v1903, 2
        %v1905 = vrot.slane %v1831, 7
        %v1906 = vrot.slane %v1905, 2
        %v1907 = vrot.slane %v1839, 7
        %v1908 = vrot.slane %v1907, 2
        %v1909 = vrot.slane %v1847, 7
        %v1910 = vrot.slane %v1909, 2
        %v1911 = vrot.slane %v1846, 7
        %v1912 = vrot.slane %v1911, 2
        %v1913 = vrot.slane %v1848, 7
        %v1914 = vrot.slane %v1913, 2
        %v1915 = vrot.slane %v1856, 7
        %v1916 = vrot.slane %v1915, 2
        %v1917 = vrot.slane %v1864, 7
        %v1918 = vrot.slane %v1917, 2
        %v1919 = vrot.slane %v1863, 7
        %v1920 = vrot.slane %v1919, 2
        %v1921 = vrot.slane %v1865, 7
        %v1922 = vrot.slane %v1921, 2
        %v1923 = vrot.slane %v1873, 7
        %v1924 = vrot.slane %v1923, 2
        %v1925 = vrot.slane %v1881, 7
        %v1926 = vrot.slane %v1925, 2
        %v1927 = vrot.slane %v1880, 7
        %v1928 = vrot.slane %v1927, 2
        %v1929 = vrot.slane %v1882, 7
        %v1930 = vrot.slane %v1929, 2
        %v1947 = vmax.f32 %v1822, %v1900
        %v1948 = vmax.f32 %v1830, %v1902
        %v1949 = vmax.f32 %v1829, %v1904
        %v1950 = vmax.f32 %v1831, %v1906
        %v1951 = vmax.f32 %v1839, %v1908
        %v1952 = vmax.f32 %v1847, %v1910
        %v1953 = vmax.f32 %v1846, %v1912
        %v1954 = vmax.f32 %v1848, %v1914
        %v1955 = vmax.f32 %v1856, %v1916
        %v1956 = vmax.f32 %v1864, %v1918
        %v1957 = vmax.f32 %v1863, %v1920
        %v1958 = vmax.f32 %v1865, %v1922
        %v1959 = vmax.f32 %v1873, %v1924
        %v1960 = vmax.f32 %v1881, %v1926
        %v1961 = vmax.f32 %v1880, %v1928
        %v1962 = vmax.f32 %v1882, %v1930
        %v1963 = vld [vmem:[%s6] sm:$0x1]
        %v1964 = vld [vmem:[%s5] sm:$0xff]
        %v1965 = vld [vmem:[%s5 + $0x8] sm:$0xff]
        %v1966 = vld [vmem:[%s5 + $0x10] sm:$0xff]
        %v1967 = vld [vmem:[%s5 + $0x18] sm:$0xff]
        %v1968 = vld [vmem:[%s5 + $0x20] sm:$0xff]
        %v1969 = vld [vmem:[%s5 + $0x28] sm:$0xff]
        %v1970 = vld [vmem:[%s5 + $0x30] sm:$0xff]
        %v1971 = vld [vmem:[%s5 + $0x38] sm:$0xff]
        %v1972 = vld [vmem:[%s5 + $0x40] sm:$0xff]
        %v1973 = vld [vmem:[%s5 + $0x48] sm:$0xff]
        %v1974 = vld [vmem:[%s5 + $0x50] sm:$0xff]
        %v1975 = vld [vmem:[%s5 + $0x58] sm:$0xff]
        %v1976 = vld [vmem:[%s5 + $0x60] sm:$0xff]
        %v1977 = vld [vmem:[%s5 + $0x68] sm:$0xff]
        %v1978 = vld [vmem:[%s5 + $0x70] sm:$0xff]
        %v1979 = vld [vmem:[%s5 + $0x78] sm:$0xff]
        %v1984 = vlaneseq
        %v1985 = vshrl.u32 %v1984, 7
        %v1986 = vsub.s32 0, %v1985
        %v1987 = vrot.slane %v1947, %v1986
        %v1988 = vlaneseq
        %v1989 = vshrl.u32 %v1988, 7
        %v1990 = vsub.s32 0, %v1989
        %v1991 = vrot.slane %v1951, %v1990
        %v1992 = vlaneseq
        %v1993 = vshrl.u32 %v1992, 7
        %v1994 = vsub.s32 0, %v1993
        %v1995 = vrot.slane %v1955, %v1994
        %v1996 = vlaneseq
        %v1997 = vshrl.u32 %v1996, 7
        %v1998 = vsub.s32 0, %v1997
        %v1999 = vrot.slane %v1959, %v1998
        %v2000 = vsel %vm1351, %v1991, %v1987
        %v2001 = vsel %vm1353, %v1995, %v2000
        %v2002 = vsel %vm1355, %v1999, %v2001
        %2004 = vmatprep.subr.mxu0 0.0
        %2005 = vmatpush1.msra.mxu0 %v1979
        %2006 = vmatprep.subr.mxu0 0.0
        %2007 = vmatpush1.msra.mxu0 %v1978
        %2008 = vmatprep.subr.mxu0 0.0
        %2009 = vmatpush1.msra.mxu0 %v1977
        %2010 = vmatprep.subr.mxu0 0.0
        %2011 = vmatpush1.msra.mxu0 %v1976
        %2012 = vmatprep.subr.mxu0 0.0
        %2013 = vmatpush1.msra.mxu0 %v1975
        %2014 = vmatprep.subr.mxu0 0.0
        %2015 = vmatpush1.msra.mxu0 %v1974
        %2016 = vmatprep.subr.mxu0 0.0
        %2017 = vmatpush1.msra.mxu0 %v1973
        %2018 = vmatprep.subr.mxu0 0.0
        %2019 = vmatpush1.msra.mxu0 %v1972
        %2020 = vmatprep.subr.mxu0 0.0
        %2021 = vmatpush1.msra.mxu0 %v1971
        %2022 = vmatprep.subr.mxu0 0.0
        %2023 = vmatpush1.msra.mxu0 %v1970
        %2024 = vmatprep.subr.mxu0 0.0
        %2025 = vmatpush1.msra.mxu0 %v1969
        %2026 = vmatprep.subr.mxu0 0.0
        %2027 = vmatpush1.msra.mxu0 %v1968
        %2028 = vmatprep.subr.mxu0 0.0
        %2029 = vmatpush1.msra.mxu0 %v1967
        %2030 = vmatprep.subr.mxu0 0.0
        %2031 = vmatpush1.msra.mxu0 %v1966
        %2032 = vmatprep.subr.mxu0 0.0
        %2033 = vmatpush1.msra.mxu0 %v1965
        %2034 = vmatprep.subr.mxu0 0.0
        %2035 = vmatpush1.msra.mxu0 %v1964
        %2036 = vmatprep.subr.mxu0 0.0
        %2037 = vmatpush2.msra.mxu0 0.0
        %2038 = vmatprep.subr.mxu0 0.0
        %2039 = vmatpush2.msra.mxu0 0.0
        %2040 = vmatprep.subr.mxu0 0.0
        %2041 = vmatpush2.msra.mxu0 0.0
        %2042 = vmatprep.subr.mxu0 0.0
        %2043 = vmatpush2.msra.mxu0 0.0
        %2044 = vmatprep.subr.mxu0 0.0
        %2045 = vmatpush2.msra.mxu0 0.0
        %2046 = vmatprep.subr.mxu0 0.0
        %2047 = vmatpush2.msra.mxu0 0.0
        %2048 = vmatprep.subr.mxu0 0.0
        %2049 = vmatpush2.msra.mxu0 0.0
        %2050 = vmatprep.subr.mxu0 0.0
        %2051 = vmatpush2.msra.mxu0 0.0
        %2052 = vmatprep.subr.mxu0 0.0
        %2053 = vmatpush2.msra.mxu0 0.0
        %2054 = vmatprep.subr.mxu0 0.0
        %2055 = vmatpush2.msra.mxu0 0.0
        %2056 = vmatprep.subr.mxu0 0.0
        %2057 = vmatpush2.msra.mxu0 0.0
        %2058 = vmatprep.subr.mxu0 0.0
        %2059 = vmatpush2.msra.mxu0 0.0
        %2060 = vmatprep.subr.mxu0 0.0
        %2061 = vmatpush2.msra.mxu0 0.0
        %2062 = vmatprep.subr.mxu0 0.0
        %2063 = vmatpush2.msra.mxu0 0.0
        %2064 = vmatprep.subr.mxu0 0.0
        %2065 = vmatpush2.msra.mxu0 0.0
        %2066 = vmatprep.subr.mxu0 0.0
        %2067 = vmatpush2.msra.mxu0 0.0
        %2068 = vmatprep.mubr.f32.mxu0 0.0
        %2069 = vmatmul.mubr.f32.gmra.mxu0 %v2002
        %v2070 = vpop.f32.mrf.mxu0
        %v2071 = vadd.f32 0.0, %v2070
        %v2072 = vpop.f32.mrf.mxu0
        %2073 = vdwg.mxu0
        %v2075 = vlaneseq
        %v2076 = vshrl.u32 %v2075, 7
        %v2077 = vsub.s32 0, %v2076
        %v2078 = vrot.slane %v1963, %v2077
        %v2080 = vadd.f32 %v2078, %v2071
        %s2081 = scalar_lea.vmem %s5, 128
        %v2082 = vld [vmem:[%s2081] sm:$0xff]
        %v2083 = vld [vmem:[%s2081 + $0x8] sm:$0xff]
        %v2084 = vld [vmem:[%s2081 + $0x10] sm:$0xff]
        %v2085 = vld [vmem:[%s2081 + $0x18] sm:$0xff]
        %v2086 = vld [vmem:[%s2081 + $0x20] sm:$0xff]
        %v2087 = vld [vmem:[%s2081 + $0x28] sm:$0xff]
        %v2088 = vld [vmem:[%s2081 + $0x30] sm:$0xff]
        %v2089 = vld [vmem:[%s2081 + $0x38] sm:$0xff]
        %v2090 = vld [vmem:[%s2081 + $0x40] sm:$0xff]
        %v2091 = vld [vmem:[%s2081 + $0x48] sm:$0xff]
        %v2092 = vld [vmem:[%s2081 + $0x50] sm:$0xff]
        %v2093 = vld [vmem:[%s2081 + $0x58] sm:$0xff]
        %v2094 = vld [vmem:[%s2081 + $0x60] sm:$0xff]
        %v2095 = vld [vmem:[%s2081 + $0x68] sm:$0xff]
        %v2096 = vld [vmem:[%s2081 + $0x70] sm:$0xff]
        %v2097 = vld [vmem:[%s2081 + $0x78] sm:$0xff]
        %v2102 = vlaneseq
        %v2103 = vshrl.u32 %v2102, 7
        %v2104 = vsub.s32 0, %v2103
        %v2105 = vrot.slane %v1948, %v2104
        %v2106 = vlaneseq
        %v2107 = vshrl.u32 %v2106, 7
        %v2108 = vsub.s32 0, %v2107
        %v2109 = vrot.slane %v1952, %v2108
        %v2110 = vlaneseq
        %v2111 = vshrl.u32 %v2110, 7
        %v2112 = vsub.s32 0, %v2111
        %v2113 = vrot.slane %v1956, %v2112
        %v2114 = vlaneseq
        %v2115 = vshrl.u32 %v2114, 7
        %v2116 = vsub.s32 0, %v2115
        %v2117 = vrot.slane %v1960, %v2116
        %v2118 = vsel %vm1351, %v2109, %v2105
        %v2119 = vsel %vm1353, %v2113, %v2118
        %v2120 = vsel %vm1355, %v2117, %v2119
        %2122 = vmatprep.subr.mxu0 0.0
        %2123 = vmatpush1.msra.mxu0 %v2097
        %2124 = vmatprep.subr.mxu0 0.0
        %2125 = vmatpush1.msra.mxu0 %v2096
        %2126 = vmatprep.subr.mxu0 0.0
        %2127 = vmatpush1.msra.mxu0 %v2095
        %2128 = vmatprep.subr.mxu0 0.0
        %2129 = vmatpush1.msra.mxu0 %v2094
        %2130 = vmatprep.subr.mxu0 0.0
        %2131 = vmatpush1.msra.mxu0 %v2093
        %2132 = vmatprep.subr.mxu0 0.0
        %2133 = vmatpush1.msra.mxu0 %v2092
        %2134 = vmatprep.subr.mxu0 0.0
        %2135 = vmatpush1.msra.mxu0 %v2091
        %2136 = vmatprep.subr.mxu0 0.0
        %2137 = vmatpush1.msra.mxu0 %v2090
        %2138 = vmatprep.subr.mxu0 0.0
        %2139 = vmatpush1.msra.mxu0 %v2089
        %2140 = vmatprep.subr.mxu0 0.0
        %2141 = vmatpush1.msra.mxu0 %v2088
        %2142 = vmatprep.subr.mxu0 0.0
        %2143 = vmatpush1.msra.mxu0 %v2087
        %2144 = vmatprep.subr.mxu0 0.0
        %2145 = vmatpush1.msra.mxu0 %v2086
        %2146 = vmatprep.subr.mxu0 0.0
        %2147 = vmatpush1.msra.mxu0 %v2085
        %2148 = vmatprep.subr.mxu0 0.0
        %2149 = vmatpush1.msra.mxu0 %v2084
        %2150 = vmatprep.subr.mxu0 0.0
        %2151 = vmatpush1.msra.mxu0 %v2083
        %2152 = vmatprep.subr.mxu0 0.0
        %2153 = vmatpush1.msra.mxu0 %v2082
        %2154 = vmatprep.subr.mxu0 0.0
        %2155 = vmatpush2.msra.mxu0 0.0
        %2156 = vmatprep.subr.mxu0 0.0
        %2157 = vmatpush2.msra.mxu0 0.0
        %2158 = vmatprep.subr.mxu0 0.0
        %2159 = vmatpush2.msra.mxu0 0.0
        %2160 = vmatprep.subr.mxu0 0.0
        %2161 = vmatpush2.msra.mxu0 0.0
        %2162 = vmatprep.subr.mxu0 0.0
        %2163 = vmatpush2.msra.mxu0 0.0
        %2164 = vmatprep.subr.mxu0 0.0
        %2165 = vmatpush2.msra.mxu0 0.0
        %2166 = vmatprep.subr.mxu0 0.0
        %2167 = vmatpush2.msra.mxu0 0.0
        %2168 = vmatprep.subr.mxu0 0.0
        %2169 = vmatpush2.msra.mxu0 0.0
        %2170 = vmatprep.subr.mxu0 0.0
        %2171 = vmatpush2.msra.mxu0 0.0
        %2172 = vmatprep.subr.mxu0 0.0
        %2173 = vmatpush2.msra.mxu0 0.0
        %2174 = vmatprep.subr.mxu0 0.0
        %2175 = vmatpush2.msra.mxu0 0.0
        %2176 = vmatprep.subr.mxu0 0.0
        %2177 = vmatpush2.msra.mxu0 0.0
        %2178 = vmatprep.subr.mxu0 0.0
        %2179 = vmatpush2.msra.mxu0 0.0
        %2180 = vmatprep.subr.mxu0 0.0
        %2181 = vmatpush2.msra.mxu0 0.0
        %2182 = vmatprep.subr.mxu0 0.0
        %2183 = vmatpush2.msra.mxu0 0.0
        %2184 = vmatprep.subr.mxu0 0.0
        %2185 = vmatpush2.msra.mxu0 0.0
        %2186 = vmatprep.mubr.f32.mxu0 0.0
        %2187 = vmatmul.mubr.f32.gmra.mxu0 %v2120
        %v2188 = vpop.f32.mrf.mxu0
        %v2189 = vadd.f32 0.0, %v2188
        %v2190 = vpop.f32.mrf.mxu0
        %2191 = vdwg.mxu0
        %v2192 = vadd.f32 %v2080, %v2189
        %s2193 = scalar_lea.vmem %s5, 256
        %v2194 = vld [vmem:[%s2193] sm:$0xff]
        %v2195 = vld [vmem:[%s2193 + $0x8] sm:$0xff]
        %v2196 = vld [vmem:[%s2193 + $0x10] sm:$0xff]
        %v2197 = vld [vmem:[%s2193 + $0x18] sm:$0xff]
        %v2198 = vld [vmem:[%s2193 + $0x20] sm:$0xff]
        %v2199 = vld [vmem:[%s2193 + $0x28] sm:$0xff]
        %v2200 = vld [vmem:[%s2193 + $0x30] sm:$0xff]
        %v2201 = vld [vmem:[%s2193 + $0x38] sm:$0xff]
        %v2202 = vld [vmem:[%s2193 + $0x40] sm:$0xff]
        %v2203 = vld [vmem:[%s2193 + $0x48] sm:$0xff]
        %v2204 = vld [vmem:[%s2193 + $0x50] sm:$0xff]
        %v2205 = vld [vmem:[%s2193 + $0x58] sm:$0xff]
        %v2206 = vld [vmem:[%s2193 + $0x60] sm:$0xff]
        %v2207 = vld [vmem:[%s2193 + $0x68] sm:$0xff]
        %v2208 = vld [vmem:[%s2193 + $0x70] sm:$0xff]
        %v2209 = vld [vmem:[%s2193 + $0x78] sm:$0xff]
        %v2214 = vlaneseq
        %v2215 = vshrl.u32 %v2214, 7
        %v2216 = vsub.s32 0, %v2215
        %v2217 = vrot.slane %v1949, %v2216
        %v2218 = vlaneseq
        %v2219 = vshrl.u32 %v2218, 7
        %v2220 = vsub.s32 0, %v2219
        %v2221 = vrot.slane %v1953, %v2220
        %v2222 = vlaneseq
        %v2223 = vshrl.u32 %v2222, 7
        %v2224 = vsub.s32 0, %v2223
        %v2225 = vrot.slane %v1957, %v2224
        %v2226 = vlaneseq
        %v2227 = vshrl.u32 %v2226, 7
        %v2228 = vsub.s32 0, %v2227
        %v2229 = vrot.slane %v1961, %v2228
        %v2230 = vsel %vm1351, %v2221, %v2217
        %v2231 = vsel %vm1353, %v2225, %v2230
        %v2232 = vsel %vm1355, %v2229, %v2231
        %2234 = vmatprep.subr.mxu0 0.0
        %2235 = vmatpush1.msra.mxu0 %v2209
        %2236 = vmatprep.subr.mxu0 0.0
        %2237 = vmatpush1.msra.mxu0 %v2208
        %2238 = vmatprep.subr.mxu0 0.0
        %2239 = vmatpush1.msra.mxu0 %v2207
        %2240 = vmatprep.subr.mxu0 0.0
        %2241 = vmatpush1.msra.mxu0 %v2206
        %2242 = vmatprep.subr.mxu0 0.0
        %2243 = vmatpush1.msra.mxu0 %v2205
        %2244 = vmatprep.subr.mxu0 0.0
        %2245 = vmatpush1.msra.mxu0 %v2204
        %2246 = vmatprep.subr.mxu0 0.0
        %2247 = vmatpush1.msra.mxu0 %v2203
        %2248 = vmatprep.subr.mxu0 0.0
        %2249 = vmatpush1.msra.mxu0 %v2202
        %2250 = vmatprep.subr.mxu0 0.0
        %2251 = vmatpush1.msra.mxu0 %v2201
        %2252 = vmatprep.subr.mxu0 0.0
        %2253 = vmatpush1.msra.mxu0 %v2200
        %2254 = vmatprep.subr.mxu0 0.0
        %2255 = vmatpush1.msra.mxu0 %v2199
        %2256 = vmatprep.subr.mxu0 0.0
        %2257 = vmatpush1.msra.mxu0 %v2198
        %2258 = vmatprep.subr.mxu0 0.0
        %2259 = vmatpush1.msra.mxu0 %v2197
        %2260 = vmatprep.subr.mxu0 0.0
        %2261 = vmatpush1.msra.mxu0 %v2196
        %2262 = vmatprep.subr.mxu0 0.0
        %2263 = vmatpush1.msra.mxu0 %v2195
        %2264 = vmatprep.subr.mxu0 0.0
        %2265 = vmatpush1.msra.mxu0 %v2194
        %2266 = vmatprep.subr.mxu0 0.0
        %2267 = vmatpush2.msra.mxu0 0.0
        %2268 = vmatprep.subr.mxu0 0.0
        %2269 = vmatpush2.msra.mxu0 0.0
        %2270 = vmatprep.subr.mxu0 0.0
        %2271 = vmatpush2.msra.mxu0 0.0
        %2272 = vmatprep.subr.mxu0 0.0
        %2273 = vmatpush2.msra.mxu0 0.0
        %2274 = vmatprep.subr.mxu0 0.0
        %2275 = vmatpush2.msra.mxu0 0.0
        %2276 = vmatprep.subr.mxu0 0.0
        %2277 = vmatpush2.msra.mxu0 0.0
        %2278 = vmatprep.subr.mxu0 0.0
        %2279 = vmatpush2.msra.mxu0 0.0
        %2280 = vmatprep.subr.mxu0 0.0
        %2281 = vmatpush2.msra.mxu0 0.0
        %2282 = vmatprep.subr.mxu0 0.0
        %2283 = vmatpush2.msra.mxu0 0.0
        %2284 = vmatprep.subr.mxu0 0.0
        %2285 = vmatpush2.msra.mxu0 0.0
        %2286 = vmatprep.subr.mxu0 0.0
        %2287 = vmatpush2.msra.mxu0 0.0
        %2288 = vmatprep.subr.mxu0 0.0
        %2289 = vmatpush2.msra.mxu0 0.0
        %2290 = vmatprep.subr.mxu0 0.0
        %2291 = vmatpush2.msra.mxu0 0.0
        %2292 = vmatprep.subr.mxu0 0.0
        %2293 = vmatpush2.msra.mxu0 0.0
        %2294 = vmatprep.subr.mxu0 0.0
        %2295 = vmatpush2.msra.mxu0 0.0
        %2296 = vmatprep.subr.mxu0 0.0
        %2297 = vmatpush2.msra.mxu0 0.0
        %2298 = vmatprep.mubr.f32.mxu0 0.0
        %2299 = vmatmul.mubr.f32.gmra.mxu0 %v2232
        %v2300 = vpop.f32.mrf.mxu0
        %v2301 = vadd.f32 0.0, %v2300
        %v2302 = vpop.f32.mrf.mxu0
        %2303 = vdwg.mxu0
        %v2304 = vadd.f32 %v2192, %v2301
        %s2305 = scalar_lea.vmem %s5, 384
        %v2306 = vld [vmem:[%s2305] sm:$0xff]
        %v2307 = vld [vmem:[%s2305 + $0x8] sm:$0xff]
        %v2308 = vld [vmem:[%s2305 + $0x10] sm:$0xff]
        %v2309 = vld [vmem:[%s2305 + $0x18] sm:$0xff]
        %v2310 = vld [vmem:[%s2305 + $0x20] sm:$0xff]
        %v2311 = vld [vmem:[%s2305 + $0x28] sm:$0xff]
        %v2312 = vld [vmem:[%s2305 + $0x30] sm:$0xff]
        %v2313 = vld [vmem:[%s2305 + $0x38] sm:$0xff]
        %v2314 = vld [vmem:[%s2305 + $0x40] sm:$0xff]
        %v2315 = vld [vmem:[%s2305 + $0x48] sm:$0xff]
        %v2316 = vld [vmem:[%s2305 + $0x50] sm:$0xff]
        %v2317 = vld [vmem:[%s2305 + $0x58] sm:$0xff]
        %v2318 = vld [vmem:[%s2305 + $0x60] sm:$0xff]
        %v2319 = vld [vmem:[%s2305 + $0x68] sm:$0xff]
        %v2320 = vld [vmem:[%s2305 + $0x70] sm:$0xff]
        %v2321 = vld [vmem:[%s2305 + $0x78] sm:$0xff]
        %v2326 = vlaneseq
        %v2327 = vshrl.u32 %v2326, 7
        %v2328 = vsub.s32 0, %v2327
        %v2329 = vrot.slane %v1950, %v2328
        %v2330 = vlaneseq
        %v2331 = vshrl.u32 %v2330, 7
        %v2332 = vsub.s32 0, %v2331
        %v2333 = vrot.slane %v1954, %v2332
        %v2334 = vlaneseq
        %v2335 = vshrl.u32 %v2334, 7
        %v2336 = vsub.s32 0, %v2335
        %v2337 = vrot.slane %v1958, %v2336
        %v2338 = vlaneseq
        %v2339 = vshrl.u32 %v2338, 7
        %v2340 = vsub.s32 0, %v2339
        %v2341 = vrot.slane %v1962, %v2340
        %v2342 = vsel %vm1351, %v2333, %v2329
        %v2343 = vsel %vm1353, %v2337, %v2342
        %v2344 = vsel %vm1355, %v2341, %v2343
        %2346 = vmatprep.subr.mxu0 0.0
        %2347 = vmatpush1.msra.mxu0 %v2321
        %2348 = vmatprep.subr.mxu0 0.0
        %2349 = vmatpush1.msra.mxu0 %v2320
        %2350 = vmatprep.subr.mxu0 0.0
        %2351 = vmatpush1.msra.mxu0 %v2319
        %2352 = vmatprep.subr.mxu0 0.0
        %2353 = vmatpush1.msra.mxu0 %v2318
        %2354 = vmatprep.subr.mxu0 0.0
        %2355 = vmatpush1.msra.mxu0 %v2317
        %2356 = vmatprep.subr.mxu0 0.0
        %2357 = vmatpush1.msra.mxu0 %v2316
        %2358 = vmatprep.subr.mxu0 0.0
        %2359 = vmatpush1.msra.mxu0 %v2315
        %2360 = vmatprep.subr.mxu0 0.0
        %2361 = vmatpush1.msra.mxu0 %v2314
        %2362 = vmatprep.subr.mxu0 0.0
        %2363 = vmatpush1.msra.mxu0 %v2313
        %2364 = vmatprep.subr.mxu0 0.0
        %2365 = vmatpush1.msra.mxu0 %v2312
        %2366 = vmatprep.subr.mxu0 0.0
        %2367 = vmatpush1.msra.mxu0 %v2311
        %2368 = vmatprep.subr.mxu0 0.0
        %2369 = vmatpush1.msra.mxu0 %v2310
        %2370 = vmatprep.subr.mxu0 0.0
        %2371 = vmatpush1.msra.mxu0 %v2309
        %2372 = vmatprep.subr.mxu0 0.0
        %2373 = vmatpush1.msra.mxu0 %v2308
        %2374 = vmatprep.subr.mxu0 0.0
        %2375 = vmatpush1.msra.mxu0 %v2307
        %2376 = vmatprep.subr.mxu0 0.0
        %2377 = vmatpush1.msra.mxu0 %v2306
        %2378 = vmatprep.subr.mxu0 0.0
        %2379 = vmatpush2.msra.mxu0 0.0
        %2380 = vmatprep.subr.mxu0 0.0
        %2381 = vmatpush2.msra.mxu0 0.0
        %2382 = vmatprep.subr.mxu0 0.0
        %2383 = vmatpush2.msra.mxu0 0.0
        %2384 = vmatprep.subr.mxu0 0.0
        %2385 = vmatpush2.msra.mxu0 0.0
        %2386 = vmatprep.subr.mxu0 0.0
        %2387 = vmatpush2.msra.mxu0 0.0
        %2388 = vmatprep.subr.mxu0 0.0
        %2389 = vmatpush2.msra.mxu0 0.0
        %2390 = vmatprep.subr.mxu0 0.0
        %2391 = vmatpush2.msra.mxu0 0.0
        %2392 = vmatprep.subr.mxu0 0.0
        %2393 = vmatpush2.msra.mxu0 0.0
        %2394 = vmatprep.subr.mxu0 0.0
        %2395 = vmatpush2.msra.mxu0 0.0
        %2396 = vmatprep.subr.mxu0 0.0
        %2397 = vmatpush2.msra.mxu0 0.0
        %2398 = vmatprep.subr.mxu0 0.0
        %2399 = vmatpush2.msra.mxu0 0.0
        %2400 = vmatprep.subr.mxu0 0.0
        %2401 = vmatpush2.msra.mxu0 0.0
        %2402 = vmatprep.subr.mxu0 0.0
        %2403 = vmatpush2.msra.mxu0 0.0
        %2404 = vmatprep.subr.mxu0 0.0
        %2405 = vmatpush2.msra.mxu0 0.0
        %2406 = vmatprep.subr.mxu0 0.0
        %2407 = vmatpush2.msra.mxu0 0.0
        %2408 = vmatprep.subr.mxu0 0.0
        %2409 = vmatpush2.msra.mxu0 0.0
        %2410 = vmatprep.mubr.f32.mxu0 0.0
        %2411 = vmatmul.mubr.f32.gmra.mxu0 %v2344
        %v2412 = vpop.f32.mrf.mxu0
        %v2413 = vadd.f32 0.0, %v2412
        %v2414 = vpop.f32.mrf.mxu0
        %2415 = vdwg.mxu0
        %v2416 = vadd.f32 %v2304, %v2413
        %v2417 = vmax.f32 %v2416, 0.0
        %v2418 = vld [vmem:[%s7] sm:$0xff]
        %v2419 = vld [vmem:[%s7 + $0x8] sm:$0xff]
        %v2420 = vld [vmem:[%s7 + $0x10] sm:$0xff]
        %v2421 = vld [vmem:[%s7 + $0x18] sm:$0xff]
        %v2422 = vld [vmem:[%s7 + $0x20] sm:$0xff]
        %v2423 = vld [vmem:[%s7 + $0x28] sm:$0xff]
        %v2424 = vld [vmem:[%s7 + $0x30] sm:$0xff]
        %v2425 = vld [vmem:[%s7 + $0x38] sm:$0xff]
        %v2426 = vld [vmem:[%s7 + $0x40] sm:$0xff]
        %v2427 = vld [vmem:[%s7 + $0x48] sm:$0xff]
        %v2428 = vld [vmem:[%s7 + $0x50] sm:$0xff]
        %v2429 = vld [vmem:[%s7 + $0x58] sm:$0xff]
        %v2430 = vld [vmem:[%s7 + $0x60] sm:$0xff]
        %v2431 = vld [vmem:[%s7 + $0x68] sm:$0xff]
        %v2432 = vld [vmem:[%s7 + $0x70] sm:$0xff]
        %v2433 = vld [vmem:[%s7 + $0x78] sm:$0xff]
        %v2434 = vld [vmem:[%s8] sm:$0x1]
        %v2436 = vlaneseq
        %v2437 = vshrl.u32 %v2436, 7
        %v2438 = vsub.s32 0, %v2437
        %v2439 = vrot.slane %v2434, %v2438
        %2441 = vmatprep.subr.mxu0 0.0
        %2442 = vmatpush1.msra.mxu0 %v2433
        %2443 = vmatprep.subr.mxu0 0.0
        %2444 = vmatpush1.msra.mxu0 %v2432
        %2445 = vmatprep.subr.mxu0 0.0
        %2446 = vmatpush1.msra.mxu0 %v2431
        %2447 = vmatprep.subr.mxu0 0.0
        %2448 = vmatpush1.msra.mxu0 %v2430
        %2449 = vmatprep.subr.mxu0 0.0
        %2450 = vmatpush1.msra.mxu0 %v2429
        %2451 = vmatprep.subr.mxu0 0.0
        %2452 = vmatpush1.msra.mxu0 %v2428
        %2453 = vmatprep.subr.mxu0 0.0
        %2454 = vmatpush1.msra.mxu0 %v2427
        %2455 = vmatprep.subr.mxu0 0.0
        %2456 = vmatpush1.msra.mxu0 %v2426
        %2457 = vmatprep.subr.mxu0 0.0
        %2458 = vmatpush1.msra.mxu0 %v2425
        %2459 = vmatprep.subr.mxu0 0.0
        %2460 = vmatpush1.msra.mxu0 %v2424
        %2461 = vmatprep.subr.mxu0 0.0
        %2462 = vmatpush1.msra.mxu0 %v2423
        %2463 = vmatprep.subr.mxu0 0.0
        %2464 = vmatpush1.msra.mxu0 %v2422
        %2465 = vmatprep.subr.mxu0 0.0
        %2466 = vmatpush1.msra.mxu0 %v2421
        %2467 = vmatprep.subr.mxu0 0.0
        %2468 = vmatpush1.msra.mxu0 %v2420
        %2469 = vmatprep.subr.mxu0 0.0
        %2470 = vmatpush1.msra.mxu0 %v2419
        %2471 = vmatprep.subr.mxu0 0.0
        %2472 = vmatpush1.msra.mxu0 %v2418
        %2473 = vmatprep.subr.mxu0 0.0
        %2474 = vmatpush2.msra.mxu0 0.0
        %2475 = vmatprep.subr.mxu0 0.0
        %2476 = vmatpush2.msra.mxu0 0.0
        %2477 = vmatprep.subr.mxu0 0.0
        %2478 = vmatpush2.msra.mxu0 0.0
        %2479 = vmatprep.subr.mxu0 0.0
        %2480 = vmatpush2.msra.mxu0 0.0
        %2481 = vmatprep.subr.mxu0 0.0
        %2482 = vmatpush2.msra.mxu0 0.0
        %2483 = vmatprep.subr.mxu0 0.0
        %2484 = vmatpush2.msra.mxu0 0.0
        %2485 = vmatprep.subr.mxu0 0.0
        %2486 = vmatpush2.msra.mxu0 0.0
        %2487 = vmatprep.subr.mxu0 0.0
        %2488 = vmatpush2.msra.mxu0 0.0
        %2489 = vmatprep.subr.mxu0 0.0
        %2490 = vmatpush2.msra.mxu0 0.0
        %2491 = vmatprep.subr.mxu0 0.0
        %2492 = vmatpush2.msra.mxu0 0.0
        %2493 = vmatprep.subr.mxu0 0.0
        %2494 = vmatpush2.msra.mxu0 0.0
        %2495 = vmatprep.subr.mxu0 0.0
        %2496 = vmatpush2.msra.mxu0 0.0
        %2497 = vmatprep.subr.mxu0 0.0
        %2498 = vmatpush2.msra.mxu0 0.0
        %2499 = vmatprep.subr.mxu0 0.0
        %2500 = vmatpush2.msra.mxu0 0.0
        %2501 = vmatprep.subr.mxu0 0.0
        %2502 = vmatpush2.msra.mxu0 0.0
        %2503 = vmatprep.subr.mxu0 0.0
        %2504 = vmatpush2.msra.mxu0 0.0
        %2505 = vmatprep.mubr.f32.mxu0 0.0
        %2506 = vmatmul.mubr.f32.gmra.mxu0 %v2417
        %v2507 = vpop.f32.mrf.mxu0
        %v2508 = vadd.f32 %v2439, %v2507
        %v2509 = vpop.f32.mrf.mxu0
        %2510 = vdwg.mxu0
        %v2513 = vunpack.c.l.s4 1966171168
        %v2514 = vunpack.c.0.s8 %v2513
        %v2515 = vlaneseq
        %v2516 = vshrl.u32 %v2515, 7
        %v2517 = vsub.s32 %v2514, %v2516
        %v2518 = vrot.slane %v2508, %v2517
        %v2519 = vcombine.high %v2518, %v2518
        %v2521 = vunpack.c.l.s4 1966171168
        %v2522 = vunpack.c.0.s8 %v2521
        %v2523 = vlaneseq
        %v2524 = vshrl.u32 %v2523, 7
        %v2525 = vsub.s32 %v2522, %v2524
        %v2526 = vrot.slane %v2518, %v2525
        %v2528 = vunpack.c.l.s4 1966171168
        %v2529 = vunpack.c.0.s8 %v2528
        %v2530 = vlaneseq
        %v2531 = vshrl.u32 %v2530, 7
        %v2532 = vsub.s32 %v2529, %v2531
        %v2533 = vrot.slane %v2519, %v2532
        %v2534 = vcombine.high %v2526, %v2526
        %v2535 = vcombine.high %v2533, %v2533
        %2540 = vst [vmem:[%s328] sm:$0x1] %v2526
        %2541 = vst [vmem:[%s328 + $0x1] sm:$0x1] %v2533
        %2542 = vst [vmem:[%s328 + $0x2] sm:$0x1] %v2534
        %2543 = vst [vmem:[%s328 + $0x3] sm:$0x1] %v2535
        %s2544 = sand.u32 %s225, 1
        %s2545 = scalar_lea.sflag [#allocation4], %s2544
        %s2546 = sand.u32 %s225, 1
        %s2547 = smul.addr %s2546, 4
        %s2548 = scalar_lea.vmem [#allocation3], %s2547
        // Predicated region
        $region57: #{mycnn_forward.1} parent=55 // pred_check
          %p2549 = pneg %p235
        $region58: #{mycnn_forward.1} parent=55 // pred_check_branch
          %2551 = sbr.rel (%p2549) target = $region60
        $region59: #{mycnn_forward.1} parent=55 // pred_region
          %s2552 = smul.u32 4, %s23
          %s2554 = ssub.s32 64, 64
          %2555 = vsyncadd %s2545, %s2554
          %s2556 = smul.addr %s2552, 16
          %s2557 = scalar_lea.hbm %s9, %s2556
          %s2558 = sshll.u32 %s2548, 4
          %s2559 = int_to_ptr.vmem [resolvable:$true] %s2558
          %2564 = dma.vmem_to_hbm [thread:$0]  %s2559, 64, %s2557, %s2545, 16, 16, 1
        $region60: #{mycnn_forward.1} parent=55 // pred_fallthru
          _
      $region56: #{mycnn_forward.1} parent=5 // pred_fallthru
        _
      %p2565 = scmp.le.s32.totalorder 2, %s18
      // Predicated region
      $region61: #{mycnn_forward.1} parent=5 // pred_check
        %p2566 = pneg %p2565
      $region62: #{mycnn_forward.1} parent=5 // pred_check_branch
        %2568 = sbr.rel (%p2566) target = $region64
      $region63: #{mycnn_forward.1} parent=5 // pred_region
        %s2569 = ssub.s32 %s18, 2
        // Predicated region
        $region65: #{mycnn_forward.1} parent=63 // pred_check
          %p2570 = pneg %p241
        $region66: #{mycnn_forward.1} parent=63 // pred_check_branch
          %2572 = sbr.rel (%p2570) target = $region68
        $region67: #{mycnn_forward.1} parent=63 // pred_region
          %s2573 = sand.u32 %s226, 1
          %s2574 = scalar_lea.sflag [#allocation4], %s2573
          %s2575 = sand.u32 %s226, 1
          %s2576 = smul.addr %s2575, 4
          %s2577 = scalar_lea.vmem [#allocation3], %s2576
          %2578 = dma.done %s2574, 64
        $region68: #{mycnn_forward.1} parent=63 // pred_fallthru
          _
      $region64: #{mycnn_forward.1} parent=5 // pred_fallthru
        _
    $region6: #{mycnn_forward.1} parent=1 // loop_footer
      %s22 = sadd.s32 1, %s18
    $region7: #{mycnn_forward.1} parent=1 // loop_footer_branch
      %17 = sbr.rel target = $region3
    $region8: #{mycnn_forward.1} parent=1 // loop_exit
      _
    %2579 = vsyncpa [#allocation4], 1
    %s2580 = scalar_lea.sflag [#allocation4], 1
    %2581 = vsyncpa %s2580, 1

</llo_original>
